<compile_context>
chip_gen: v7x
topology: tpu7x:2x2x1
jax: 0.10.0
libtpu: 0.0.40
codegen_flags: <defaults>
</compile_context>

<pallas_src>
import functools

import jax
import jax.numpy as jnp
from jax import lax
from jax.experimental import pallas as pl
from jax.experimental.pallas import tpu as pltpu


def _dfl_kernel(w_ref, x_ref, o_ref, *, mxu_bf16: bool):
    """One (batch, anchor-tile) block.

    w_ref: (8, 4*c1) f32 constant reduction matrix (resident).
    x_ref: (1, 4*c1, TA) logits tile (any float dtype; upcast on load).
    o_ref: (1, 4, TA) expected-bin output tile.
    """
    x = x_ref[0].astype(jnp.float32)                  # (4*c1, TA)
    # Per-anchor max over all channels is a valid softmax stabilizer (constant
    # within each side's group) and lowers as one clean sublane reduce +
    # broadcast. Floor at -60 so exp never fully underflows for a side whose
    # logits sit far below the anchor's global max (avoids 0/0).
    m = jnp.max(x, axis=0, keepdims=True)             # (1, TA)
    e = jnp.exp(jnp.maximum(x - m, -60.0))            # (4*c1, TA), in (0, 1]

    if mxu_bf16:
        # Optional single-pass bf16 MXU (v7x-style throughput), ~2^-8 relative
        # error on the result. Off by default to keep f32-level accuracy.
        r = jnp.dot(w_ref[...].astype(jnp.bfloat16), e.astype(jnp.bfloat16),
                    preferred_element_type=jnp.float32)
    else:
        # HIGHEST precision: Mosaic emits the multi-pass f32 matmul instead of
        # a single bf16 pass; the matmul is tiny (8 x 64 x TA) so this stays
        # far below the HBM DMA time per tile.
        r = jnp.dot(w_ref[...], e, preferred_element_type=jnp.float32,
                    precision=lax.Precision.HIGHEST)  # (8, TA)

    denom = r[0:4, :]                                  # sum_k exp(.)     per side
    num = r[4:8, :]                                    # sum_k k * exp(.) per side
    o_ref[0] = (num / denom).astype(o_ref.dtype)       # exact f32 divide


def _pick_anchor_tile(b: int, a: int, ta_req: int) -> int:
    """Anchor tile: multiple of 128 lanes (or the full anchor axis).

    Big tiles keep per-step DMA above the ~0.35us fixed pipeline overhead;
    the shrink loops keep >=2 (ideally >=4) parallel grid steps so both v7x
    TensorCores stay busy. VMEM is never the constraint here (64 channels only).
    """
    if a <= ta_req:
        ta = a                                   # full-extent tile (always legal)
    else:
        ta = max(128, (ta_req // 128) * 128)
    # Prefer >= 4 grid steps, never shrinking below 2048 anchors/step ...
    while ta > 2048 and ta % 256 == 0 and b * pl.cdiv(a, ta) < 4:
        ta //= 2
    # ... and guarantee >= 2 steps down to a 1024-anchor floor.
    while ta > 1024 and ta % 256 == 0 and b * pl.cdiv(a, ta) < 2:
        ta //= 2
    return ta


def dfl_forward(x: jax.Array, c1: int = 16, ta: int = 4096,
                mxu_bf16: bool = False) -> jax.Array:
    """DFL forward: x (b, 4*c1, a) -> (b, 4, a). bf16 or f32 logits accepted."""
    b, c, a = x.shape
    assert c == 4 * c1, f"expected {4 * c1} channels, got {c}"

    ta = _pick_anchor_tile(b, a, ta)

    # Constant reduction matrix: rows 0..3 = per-side ones mask, rows 4..7 =
    # per-side arange(c1) mask (the fixed 1x1 conv weight of the PyTorch DFL).
    side = jnp.arange(4 * c1) // c1
    bins = (jnp.arange(4 * c1) % c1).astype(jnp.float32)
    ones_rows = (side[None, :] == jnp.arange(4)[:, None]).astype(jnp.float32)
    w = jnp.concatenate([ones_rows, ones_rows * bins[None, :]], axis=0)  # (8, 4*c1)

    kernel = functools.partial(_dfl_kernel, mxu_bf16=mxu_bf16)
    return pl.pallas_call(
        kernel,
        out_shape=jax.ShapeDtypeStruct((b, 4, a), x.dtype),
        grid_spec=pltpu.PrefetchScalarGridSpec(
            num_scalar_prefetch=0,
            grid=(b, pl.cdiv(a, ta)),                                   # no host pad
            in_specs=[
                pl.BlockSpec((8, 4 * c1), lambda i, j: (0, 0)),         # W: resident
                pl.BlockSpec((1, 4 * c1, ta), lambda i, j: (i, 0, j)),  # logits tile
            ],
            out_specs=pl.BlockSpec((1, 4, ta), lambda i, j: (i, 0, j)),
        ),
        compiler_params=pltpu.CompilerParams(
            dimension_semantics=("parallel", "parallel")),
    )(w, x)


def dfl_reference(x: jax.Array, c1: int = 16) -> jax.Array:
    b, c, a = x.shape
    xr = x.reshape(b, 4, c1, a).transpose(0, 2, 1, 3).astype(jnp.float32)  # (b, c1, 4, a)
    p = jax.nn.softmax(xr, axis=1)
    w = jnp.arange(c1, dtype=jnp.float32).reshape(1, c1, 1, 1)
    return jnp.sum(p * w, axis=1).astype(x.dtype)                          # (b, 4, a)


if __name__ == "__main__":
    c1 = 16
    key = jax.random.PRNGKey(0)
    k1, k2, k3 = jax.random.split(key, 3)

    # 1) f32, lane-aligned anchors, explicit small tile -> multi-tile grid (2, 2)
    #    (exercises W residency across anchor tiles).
    b, a = 2, 1024
    x = jax.random.normal(k1, (b, 4 * c1, a), dtype=jnp.float32)
    y = dfl_forward(x, c1=c1, ta=512)
    jax.block_until_ready(y)
    y_ref = dfl_reference(x, c1=c1)
    assert y.shape == (b, 4, a)
    assert jnp.allclose(y, y_ref, atol=1e-2, rtol=1e-3), "mismatch vs reference"

    # 2) f32, anchor count not a multiple of 128 or of the tile -> exercises the
    #    partial last block (boundary masking, no host-side pad / slice).
    b2, a2 = 1, 300
    x2 = jax.random.normal(k2, (b2, 4 * c1, a2), dtype=jnp.float32)
    y2 = dfl_forward(x2, c1=c1, ta=256)
    jax.block_until_ready(y2)
    y2_ref = dfl_reference(x2, c1=c1)
    assert y2.shape == (b2, 4, a2)
    assert bool(jnp.all(jnp.isfinite(y2))), "non-finite values in partial block"
    assert jnp.allclose(y2, y2_ref, atol=1e-2, rtol=1e-3), "mismatch vs reference (partial)"

    # 3) bf16 logits (halves HBM read traffic; kernel upcasts to f32 internally),
    #    default tile selection.
    b3, a3 = 2, 640
    x3 = jax.random.normal(k3, (b3, 4 * c1, a3), dtype=jnp.float32).astype(jnp.bfloat16)
    y3 = dfl_forward(x3, c1=c1)
    jax.block_until_ready(y3)
    y3_ref = dfl_reference(x3, c1=c1)
    assert y3.dtype == jnp.bfloat16 and y3.shape == (b3, 4, a3)
    assert jnp.allclose(y3.astype(jnp.float32), y3_ref.astype(jnp.float32),
                        atol=7e-2, rtol=1e-2), "mismatch vs reference (bf16)"

    print("KERNEL_OK")
</pallas_src>

<mosaic_0001>
module attributes {stable_mosaic.version = 11 : i64} {
  func.func @_dfl_kernel(%arg0: i32, %arg1: i32, %arg2: memref<8x64xf32, #tpu.memory_space<vmem>>, %arg3: memref<1x64x512xf32, #tpu.memory_space<vmem>>, %arg4: memref<1x4x512xf32, #tpu.memory_space<vmem>>) attributes {dimension_semantics = [#tpu.dimension_semantics<parallel>, #tpu.dimension_semantics<parallel>], iteration_bounds = array<i64: 2, 2>, scalar_prefetch = 0 : i64, scratch_operands = 0 : i64, tpu.core_type = #tpu.core_type<tc>, window_params = [{pipeline_mode = #tpu.pipeline_mode<synchronous>, transform_indices = @transform_0, window_bounds = array<i64: 8, 64>}, {transform_indices = @transform_1, window_bounds = array<i64: 1, 64, 512>}, {transform_indices = @transform_2, window_bounds = array<i64: 1, 4, 512>}]} {
    %c0 = arith.constant 0 : index
    %c0_0 = arith.constant 0 : index
    %c0_1 = arith.constant 0 : index
    %0 = vector.load %arg3[%c0, %c0_0, %c0_1] : memref<1x64x512xf32, #tpu.memory_space<vmem>>, vector<1x64x512xf32>
    %1 = vector.shape_cast %0 : vector<1x64x512xf32> to vector<64x512xf32>
    %cst = arith.constant dense<0xFF800000> : vector<512xf32>
    %2 = vector.multi_reduction <maximumf>, %1, %cst [0] : vector<64x512xf32> to vector<512xf32>
    %3 = vector.shape_cast %2 : vector<512xf32> to vector<1x512xf32>
    %4 = vector.broadcast %3 : vector<1x512xf32> to vector<64x512xf32>
    %5 = arith.subf %1, %4 : vector<64x512xf32>
    %cst_2 = arith.constant -6.000000e+01 : f32
    %6 = vector.broadcast %cst_2 : f32 to vector<64x512xf32>
    %7 = arith.maximumf %5, %6 : vector<64x512xf32>
    %8 = math.exp %7 : vector<64x512xf32>
    %c0_3 = arith.constant 0 : index
    %c0_4 = arith.constant 0 : index
    %9 = vector.load %arg2[%c0_3, %c0_4] : memref<8x64xf32, #tpu.memory_space<vmem>>, vector<8x64xf32>
    %cst_5 = arith.constant dense<0.000000e+00> : vector<8x512xf32>
    %10 = tpu.matmul %9, %8, %cst_5 {dimension_numbers = #tpu.dot_dimension_numbers<[1], [0], [0], [1], [0, 0, 1, 1], [], []>, precision = #tpu.contract_precision<fp32>} : vector<8x64xf32>, vector<64x512xf32>, vector<8x512xf32> -> vector<8x512xf32>
    %11 = vector.extract_strided_slice %10 {offsets = [0, 0], sizes = [4, 512], strides = [1, 1]} : vector<8x512xf32> to vector<4x512xf32>
    %12 = vector.extract_strided_slice %10 {offsets = [4, 0], sizes = [4, 512], strides = [1, 1]} : vector<8x512xf32> to vector<4x512xf32>
    %13 = arith.divf %12, %11 : vector<4x512xf32>
    %c0_6 = arith.constant 0 : index
    %c0_7 = arith.constant 0 : index
    %c0_8 = arith.constant 0 : index
    %14 = vector.load %arg4[%c0_6, %c0_7, %c0_8] : memref<1x4x512xf32, #tpu.memory_space<vmem>>, vector<1x4x512xf32>
    %15 = vector.shape_cast %14 : vector<1x4x512xf32> to vector<4x512xf32>
    %16 = vector.shape_cast %13 : vector<4x512xf32> to vector<1x4x512xf32>
    tpu.vector_store %arg4[%c0_6, %c0_7, %c0_8], %16 {strides = array<i32>} : memref<1x4x512xf32, #tpu.memory_space<vmem>>, vector<1x4x512xf32>,
    return
  }
  func.func @transform_0(%arg0: i32, %arg1: i32) -> (i32, i32) {
    %c0_i32 = arith.constant 0 : i32
    %c0_i32_0 = arith.constant 0 : i32
    %c0_i32_1 = arith.constant 0 : i32
    return %c0_i32, %c0_i32_0 : i32, i32
  }
  func.func @transform_1(%arg0: i32, %arg1: i32) -> (i32, i32, i32) {
    %c0_i32 = arith.constant 0 : i32
    %c0_i32_0 = arith.constant 0 : i32
    return %arg0, %c0_i32, %arg1 : i32, i32, i32
  }
  func.func @transform_2(%arg0: i32, %arg1: i32) -> (i32, i32, i32) {
    %c0_i32 = arith.constant 0 : i32
    %c0_i32_0 = arith.constant 0 : i32
    return %arg0, %c0_i32, %arg1 : i32, i32, i32
  }
}

</mosaic_0001>

<llo_original>
// kernel: tpu_custom_call.1
$region0: #{tpu_custom_call.1}
  #allocation0 [shape = 'u32[]', space=smem, size = 0x4, offset = 0x4, fixed_abs, tag = 'smem constant byte address 0x4 - core index']
  #allocation1 [shape = 'u32[144,128]{1,0:T(1,128)}', space=vmem, size = 0x12000, scoped, tag = 'internal scratch']
  %s0 = inlined_call_operand.hbm [shape: f32[8,64], index: 0, kind: input, shape index: {}]
  %s1 = inlined_call_operand.hbm [shape: f32[2,64,1024], index: 1, kind: input, shape index: {}]
  %s2 = inlined_call_operand.hbm [shape: f32[2,4,1024], index: 2, kind: output, shape index: {}]
  %s3 = sld [smem:[#allocation0]]
  $region49: #{tpu_custom_call.1} parent=0
    _
  %s5 = ssub.s32 1, %s3
  %s6 = scalar_select 0, %s5, %s3
  $region1: #{tpu_custom_call.1} parent=0
    #allocation2 [shape = 'u8[4096]{0}', space=vmem, size = 0x1000, scoped, tag = 'input window, operand 0, single buffered']
    #allocation3 [shape = 's32[2]{0}', space=sflag, size = 0x8, scoped, tag = 'scoped memory for tpu_custom_call.1']
    #allocation4 [shape = 's32[2]{0}', space=sflag, size = 0x8, scoped, tag = 'scoped memory for tpu_custom_call.1']
    #allocation5 [shape = 'u8[262144]{0}', space=vmem, size = 0x40000, scoped, tag = 'input window, operand 1']
    #allocation6 [shape = 's32[2]{0}', space=sflag, size = 0x8, scoped, tag = 'scoped memory for tpu_custom_call.1']
    #allocation7 [shape = 'u8[16384]{0}', space=vmem, size = 0x4000, scoped, tag = 'output window, operand 0']
    %7 = vsyncpa [#allocation3], 0
    %8 = vsyncpa [#allocation6], 0
    %s9 = scalar_lea.sflag [#allocation6], 1
    %10 = vsyncpa %s9, 0
    %11 = vsyncpa [#allocation4], 0
    %s12 = scalar_lea.sflag [#allocation4], 1
    %13 = vsyncpa %s12, 0
    loop: start=0, step=1, limit=6
    $region2: #{tpu_custom_call.1} parent=1 // loop_pre_header
      _
    $region3: #{tpu_custom_call.1} parent=1 // loop_header
      %s15 = sphi 0, %s19
      %p16 = scmp.ge.s32.totalorder %s15, 6
      %s22 = sphi 0, %s34
      %s23 = sphi 0, %s30
      %s24 = sphi 0, %s22
      %s25 = sphi 0, %s23
      %s26 = sphi 0, %s24
      %s27 = sphi 0, %s25
      %s35 = sphi 0, %s35
      %s37 = sphi 0, %s35
      %s38 = sphi 0, %s37
      %s52 = sphi 0, %s38
      %s60 = sphi 0, %s62
      %s63 = sphi 0, %s60
      %s64 = sphi 0, %s63
      %s80 = sphi 0, %s64
      %s88 = sphi 0, %s90
      %s91 = sphi 0, %s88
      %s92 = sphi 0, %s91
      %s108 = sphi 0, %s92
    $region4: #{tpu_custom_call.1} parent=1 // loop_header_branch
      %18 = sbr.rel (%p16) target = $region8
    $region5: #{tpu_custom_call.1} parent=1 // loop_body
      %s20 = ssub.s32 %s15, 1
      %s21 = ssub.s32 %s15, 2
      %s28 = sadd.s32 1, %s23
      %p29 = scmp.ge.s32.totalorder %s28, 2
      %s30 = scalar_select %p29, 0, %s28
      %s31 = sadd.s32 1, %s22
      %s32 = scalar_select %p29, %s31, %s22
      %p33 = scmp.ge.s32.totalorder %s32, 2
      %s34 = scalar_select %p33, 0, %s32
      %s36 = sadd.s32 %s35, 1
      %p39 = scmp.eq.s32.totalorder %s15, 3
      %p40 = scmp.ne.s32.totalorder %s35, %s37
      %p41 = scmp.eq.s32.totalorder %s15, 0
      %p42 = por %p40, %p41
      %p43 = scmp.ne.s32.totalorder %s35, %s37
      %p44 = scmp.eq.s32.totalorder %s20, 3
      %p45 = por %p43, %p44
      %p46 = scmp.ne.s32.totalorder %s37, %s38
      %p47 = scmp.eq.s32.totalorder %s20, 0
      %p48 = por %p46, %p47
      %p49 = scmp.ne.s32.totalorder %s37, %s38
      %p50 = scmp.eq.s32.totalorder %s21, 3
      %p51 = por %p49, %p50
      %p53 = scmp.ne.s32.totalorder %s38, %s52
      %p54 = scmp.eq.s32.totalorder %s21, 0
      %p55 = por %p53, %p54
      %s56 = ssub.s32 %s22, %s34
      %s57 = ssub.s32 %s23, %s30
      %s58 = sor.u32 %s56, %s57
      %p59 = scmp.eq.s32.totalorder %s58, 0
      %s61 = sadd.s32 %s60, 1
      %s62 = scalar_select %p59, %s60, %s61
      %p65 = pneg %p59
      %p66 = scmp.eq.s32.totalorder %s15, 3
      %p67 = por %p65, %p66
      %p68 = scmp.ne.s32.totalorder %s60, %s63
      %p69 = scmp.eq.s32.totalorder %s15, 0
      %p70 = por %p68, %p69
      %p71 = scmp.ne.s32.totalorder %s60, %s63
      %p72 = scmp.eq.s32.totalorder %s20, 3
      %p73 = por %p71, %p72
      %p74 = scmp.ne.s32.totalorder %s63, %s64
      %p75 = scmp.eq.s32.totalorder %s20, 0
      %p76 = por %p74, %p75
      %p77 = scmp.ne.s32.totalorder %s63, %s64
      %p78 = scmp.eq.s32.totalorder %s21, 3
      %p79 = por %p77, %p78
      %p81 = scmp.ne.s32.totalorder %s64, %s80
      %p82 = scmp.eq.s32.totalorder %s21, 0
      %p83 = por %p81, %p82
      %s84 = ssub.s32 %s22, %s34
      %s85 = ssub.s32 %s23, %s30
      %s86 = sor.u32 %s84, %s85
      %p87 = scmp.eq.s32.totalorder %s86, 0
      %s89 = sadd.s32 %s88, 1
      %s90 = scalar_select %p87, %s88, %s89
      %p93 = pneg %p87
      %p94 = scmp.eq.s32.totalorder %s15, 3
      %p95 = por %p93, %p94
      %p96 = scmp.ne.s32.totalorder %s88, %s91
      %p97 = scmp.eq.s32.totalorder %s15, 0
      %p98 = por %p96, %p97
      %p99 = scmp.ne.s32.totalorder %s88, %s91
      %p100 = scmp.eq.s32.totalorder %s20, 3
      %p101 = por %p99, %p100
      %p102 = scmp.ne.s32.totalorder %s91, %s92
      %p103 = scmp.eq.s32.totalorder %s20, 0
      %p104 = por %p102, %p103
      %p105 = scmp.ne.s32.totalorder %s91, %s92
      %p106 = scmp.eq.s32.totalorder %s21, 3
      %p107 = por %p105, %p106
      %p109 = scmp.ne.s32.totalorder %s92, %s108
      %p110 = scmp.eq.s32.totalorder %s21, 0
      %p111 = por %p109, %p110
      %p112 = scmp.le.s32.totalorder 1, %s15
      %p113 = scmp.lt.s32.totalorder %s15, 5
      %p114 = pnand %p112, %p113
      %p115 = pneg %p114
      // Predicated region
      $region9: #{tpu_custom_call.1} parent=5 // pred_check
        _
      $region10: #{tpu_custom_call.1} parent=5 // pred_check_branch
        %117 = sbr.rel (%p114) target = $region12
      $region11: #{tpu_custom_call.1} parent=5 // pred_region
        %s118 = ssub.s32 %s15, 1
        // Predicated region
        $region13: #{tpu_custom_call.1} parent=11 // pred_check
          %p119 = pneg %p48
        $region14: #{tpu_custom_call.1} parent=11 // pred_check_branch
          %121 = sbr.rel (%p119) target = $region16
        $region15: #{tpu_custom_call.1} parent=11 // pred_region
          %s123 = ssub.s32 128, 128
          %124 = vsyncadd [#allocation3], %s123
          %s126 = sshll.u32 [#allocation2], 4
          %s127 = int_to_ptr.vmem [resolvable:$true] %s126
          %129 = dma.hbm_to_vmem [thread:$0]  %s0, 128, %s127, [#allocation3]
        $region16: #{tpu_custom_call.1} parent=11 // pred_fallthru
          _
      $region12: #{tpu_custom_call.1} parent=5 // pred_fallthru
        _
      %p130 = scmp.lt.s32.totalorder %s15, 4
      // Predicated region
      $region17: #{tpu_custom_call.1} parent=5 // pred_check
        %p131 = pneg %p130
      $region18: #{tpu_custom_call.1} parent=5 // pred_check_branch
        %133 = sbr.rel (%p131) target = $region20
      $region19: #{tpu_custom_call.1} parent=5 // pred_region
        // Predicated region
        $region21: #{tpu_custom_call.1} parent=19 // pred_check
          %p134 = pneg %p70
        $region22: #{tpu_custom_call.1} parent=19 // pred_check_branch
          %136 = sbr.rel (%p134) target = $region24
        $region23: #{tpu_custom_call.1} parent=19 // pred_region
          %s137 = sand.u32 %s60, 1
          %s138 = scalar_lea.sflag [#allocation6], %s137
          %s139 = sand.u32 %s60, 1
          %s140 = smul.addr %s139, 256
          %s141 = scalar_lea.vmem [#allocation5], %s140
          %s142 = smul.u32 4, %s23
          %s144 = ssub.s32 4096, 4096
          %145 = vsyncadd %s138, %s144
          %s146 = smul.addr %s22, 64
          %s147 = sadd.s32 %s142, %s146
          %s148 = smul.addr %s147, 128
          %s149 = scalar_lea.hbm %s1, %s148
          %s150 = sshll.u32 %s141, 4
          %s151 = int_to_ptr.vmem [resolvable:$true] %s150
          %156 = dma.hbm_to_vmem [thread:$0]  %s149, 4096, %s151, %s138, 1024, 512, 32
        $region24: #{tpu_custom_call.1} parent=19 // pred_fallthru
          _
      $region20: #{tpu_custom_call.1} parent=5 // pred_fallthru
        _
      %p157 = scmp.le.s32.totalorder 1, %s15
      %p158 = scmp.lt.s32.totalorder %s15, 5
      %p159 = pnand %p157, %p158
      %p160 = pneg %p159
      // Predicated region
      $region25: #{tpu_custom_call.1} parent=5 // pred_check
        _
      $region26: #{tpu_custom_call.1} parent=5 // pred_check_branch
        %162 = sbr.rel (%p159) target = $region28
      $region27: #{tpu_custom_call.1} parent=5 // pred_region
        %s163 = ssub.s32 %s15, 1
        // Predicated region
        $region29: #{tpu_custom_call.1} parent=27 // pred_check
          %p164 = pneg %p48
        $region30: #{tpu_custom_call.1} parent=27 // pred_check_branch
          %166 = sbr.rel (%p164) target = $region32
        $region31: #{tpu_custom_call.1} parent=27 // pred_region
          %167 = dma.done [#allocation3], 128
        $region32: #{tpu_custom_call.1} parent=27 // pred_fallthru
          _
        %s168 = sand.u32 %s63, 1
        %s169 = scalar_lea.sflag [#allocation6], %s168
        %s170 = sand.u32 %s63, 1
        %s171 = smul.addr %s170, 256
        %s172 = scalar_lea.vmem [#allocation5], %s171
        // Predicated region
        $region33: #{tpu_custom_call.1} parent=27 // pred_check
          %p173 = pneg %p76
        $region34: #{tpu_custom_call.1} parent=27 // pred_check_branch
          %175 = sbr.rel (%p173) target = $region36
        $region35: #{tpu_custom_call.1} parent=27 // pred_region
          %176 = dma.done %s169, 4096
        $region36: #{tpu_custom_call.1} parent=27 // pred_fallthru
          _
        %p177 = pneg %p48
        %p178 = pneg %p45
        %s179 = sand.u32 %s63, 1
        %s180 = scalar_lea.sflag [#allocation6], %s179
        %s181 = sand.u32 %s63, 1
        %s182 = smul.addr %s181, 256
        %s183 = scalar_lea.vmem [#allocation5], %s182
        %p184 = pneg %p76
        %p185 = pneg %p73
        %p186 = pneg %p104
        %p187 = pneg %p101
        %s188 = sand.u32 %s91, 1
        %s189 = scalar_lea.sflag [#allocation4], %s188
        %s190 = sand.u32 %s91, 1
        %s191 = smul.addr %s190, 16
        %s192 = scalar_lea.vmem [#allocation7], %s191
        %s193 = smul.u32 4, %s25
        %s194 = smul.u32 4, %s25
        %v195 = vld [vmem:[%s172] sm:$0xff]
        %v196 = vld [vmem:[%s172 + $0x8] sm:$0xff]
        %v197 = vld [vmem:[%s172 + $0x10] sm:$0xff]
        %v198 = vld [vmem:[%s172 + $0x18] sm:$0xff]
        %v199 = vld [vmem:[%s172 + $0x20] sm:$0xff]
        %v200 = vld [vmem:[%s172 + $0x28] sm:$0xff]
        %v201 = vld [vmem:[%s172 + $0x30] sm:$0xff]
        %v202 = vld [vmem:[%s172 + $0x38] sm:$0xff]
        %v203 = vld [vmem:[%s172 + $0x40] sm:$0xff]
        %v204 = vld [vmem:[%s172 + $0x48] sm:$0xff]
        %v205 = vld [vmem:[%s172 + $0x50] sm:$0xff]
        %v206 = vld [vmem:[%s172 + $0x58] sm:$0xff]
        %v207 = vld [vmem:[%s172 + $0x60] sm:$0xff]
        %v208 = vld [vmem:[%s172 + $0x68] sm:$0xff]
        %v209 = vld [vmem:[%s172 + $0x70] sm:$0xff]
        %v210 = vld [vmem:[%s172 + $0x78] sm:$0xff]
        %v211 = vld [vmem:[%s172 + $0x80] sm:$0xff]
        %v212 = vld [vmem:[%s172 + $0x88] sm:$0xff]
        %v213 = vld [vmem:[%s172 + $0x90] sm:$0xff]
        %v214 = vld [vmem:[%s172 + $0x98] sm:$0xff]
        %v215 = vld [vmem:[%s172 + $0xa0] sm:$0xff]
        %v216 = vld [vmem:[%s172 + $0xa8] sm:$0xff]
        %v217 = vld [vmem:[%s172 + $0xb0] sm:$0xff]
        %v218 = vld [vmem:[%s172 + $0xb8] sm:$0xff]
        %v219 = vld [vmem:[%s172 + $0xc0] sm:$0xff]
        %v220 = vld [vmem:[%s172 + $0xc8] sm:$0xff]
        %v221 = vld [vmem:[%s172 + $0xd0] sm:$0xff]
        %v222 = vld [vmem:[%s172 + $0xd8] sm:$0xff]
        %v223 = vld [vmem:[%s172 + $0xe0] sm:$0xff]
        %v224 = vld [vmem:[%s172 + $0xe8] sm:$0xff]
        %v225 = vld [vmem:[%s172 + $0xf0] sm:$0xff]
        %v226 = vld [vmem:[%s172 + $0xf8] sm:$0xff]
        %v227 = vmax.f32 %v195, %v199
        %v228 = vmax.f32 %v227, %v203
        %v229 = vmax.f32 %v228, %v207
        %v230 = vmax.f32 %v229, %v211
        %v231 = vmax.f32 %v230, %v215
        %v232 = vmax.f32 %v231, %v219
        %v233 = vmax.f32 %v232, %v223
        %v234 = vrot.slane %v233, 4
        %v235 = vmax.f32 %v233, %v234
        %v236 = vrot.slane %v235, 2
        %v237 = vmax.f32 %v235, %v236
        %v238 = vrot.slane %v237, 1
        %v239 = vmax.f32 %v237, %v238
        %v240 = vmax.f32 %v196, %v200
        %v241 = vmax.f32 %v240, %v204
        %v242 = vmax.f32 %v241, %v208
        %v243 = vmax.f32 %v242, %v212
        %v244 = vmax.f32 %v243, %v216
        %v245 = vmax.f32 %v244, %v220
        %v246 = vmax.f32 %v245, %v224
        %v247 = vrot.slane %v246, 4
        %v248 = vmax.f32 %v246, %v247
        %v249 = vrot.slane %v248, 2
        %v250 = vmax.f32 %v248, %v249
        %v251 = vrot.slane %v250, 1
        %v252 = vmax.f32 %v250, %v251
        %v253 = vmax.f32 %v197, %v201
        %v254 = vmax.f32 %v253, %v205
        %v255 = vmax.f32 %v254, %v209
        %v256 = vmax.f32 %v255, %v213
        %v257 = vmax.f32 %v256, %v217
        %v258 = vmax.f32 %v257, %v221
        %v259 = vmax.f32 %v258, %v225
        %v260 = vrot.slane %v259, 4
        %v261 = vmax.f32 %v259, %v260
        %v262 = vrot.slane %v261, 2
        %v263 = vmax.f32 %v261, %v262
        %v264 = vrot.slane %v263, 1
        %v265 = vmax.f32 %v263, %v264
        %v266 = vmax.f32 %v198, %v202
        %v267 = vmax.f32 %v266, %v206
        %v268 = vmax.f32 %v267, %v210
        %v269 = vmax.f32 %v268, %v214
        %v270 = vmax.f32 %v269, %v218
        %v271 = vmax.f32 %v270, %v222
        %v272 = vmax.f32 %v271, %v226
        %v273 = vrot.slane %v272, 4
        %v274 = vmax.f32 %v272, %v273
        %v275 = vrot.slane %v274, 2
        %v276 = vmax.f32 %v274, %v275
        %v277 = vrot.slane %v276, 1
        %v278 = vmax.f32 %v276, %v277
        %v279 = vsub.f32 %v195, %v239
        %v280 = vsub.f32 %v196, %v252
        %v281 = vsub.f32 %v197, %v265
        %v282 = vsub.f32 %v198, %v278
        %v283 = vsub.f32 %v199, %v239
        %v284 = vsub.f32 %v200, %v252
        %v285 = vsub.f32 %v201, %v265
        %v286 = vsub.f32 %v202, %v278
        %v287 = vsub.f32 %v203, %v239
        %v288 = vsub.f32 %v204, %v252
        %v289 = vsub.f32 %v205, %v265
        %v290 = vsub.f32 %v206, %v278
        %v291 = vsub.f32 %v207, %v239
        %v292 = vsub.f32 %v208, %v252
        %v293 = vsub.f32 %v209, %v265
        %v294 = vsub.f32 %v210, %v278
        %v295 = vsub.f32 %v211, %v239
        %v296 = vsub.f32 %v212, %v252
        %v297 = vsub.f32 %v213, %v265
        %v298 = vsub.f32 %v214, %v278
        %v299 = vsub.f32 %v215, %v239
        %v300 = vsub.f32 %v216, %v252
        %v301 = vsub.f32 %v217, %v265
        %v302 = vsub.f32 %v218, %v278
        %v303 = vsub.f32 %v219, %v239
        %v304 = vsub.f32 %v220, %v252
        %v305 = vsub.f32 %v221, %v265
        %v306 = vsub.f32 %v222, %v278
        %v307 = vsub.f32 %v223, %v239
        %v308 = vsub.f32 %v224, %v252
        %v309 = vsub.f32 %v225, %v265
        %v310 = vsub.f32 %v226, %v278
        %v311 = vmax.f32 %v279, -60.0
        %v312 = vmax.f32 %v280, -60.0
        %v313 = vmax.f32 %v281, -60.0
        %v314 = vmax.f32 %v282, -60.0
        %v315 = vmax.f32 %v283, -60.0
        %v316 = vmax.f32 %v284, -60.0
        %v317 = vmax.f32 %v285, -60.0
        %v318 = vmax.f32 %v286, -60.0
        %v319 = vmax.f32 %v287, -60.0
        %v320 = vmax.f32 %v288, -60.0
        %v321 = vmax.f32 %v289, -60.0
        %v322 = vmax.f32 %v290, -60.0
        %v323 = vmax.f32 %v291, -60.0
        %v324 = vmax.f32 %v292, -60.0
        %v325 = vmax.f32 %v293, -60.0
        %v326 = vmax.f32 %v294, -60.0
        %v327 = vmax.f32 %v295, -60.0
        %v328 = vmax.f32 %v296, -60.0
        %v329 = vmax.f32 %v297, -60.0
        %v330 = vmax.f32 %v298, -60.0
        %v331 = vmax.f32 %v299, -60.0
        %v332 = vmax.f32 %v300, -60.0
        %v333 = vmax.f32 %v301, -60.0
        %v334 = vmax.f32 %v302, -60.0
        %v335 = vmax.f32 %v303, -60.0
        %v336 = vmax.f32 %v304, -60.0
        %v337 = vmax.f32 %v305, -60.0
        %v338 = vmax.f32 %v306, -60.0
        %v339 = vmax.f32 %v307, -60.0
        %v340 = vmax.f32 %v308, -60.0
        %v341 = vmax.f32 %v309, -60.0
        %v342 = vmax.f32 %v310, -60.0
        %v343 = vmul.f32 %v311, 1.442695
        %v344 = vpow.pop %v343
        %v345 = vmul.f32 %v312, 1.442695
        %v346 = vpow.pop %v345
        %v347 = vmul.f32 %v313, 1.442695
        %v348 = vpow.pop %v347
        %v349 = vmul.f32 %v314, 1.442695
        %v350 = vpow.pop %v349
        %v351 = vmul.f32 %v315, 1.442695
        %v352 = vpow.pop %v351
        %v353 = vmul.f32 %v316, 1.442695
        %v354 = vpow.pop %v353
        %v355 = vmul.f32 %v317, 1.442695
        %v356 = vpow.pop %v355
        %v357 = vmul.f32 %v318, 1.442695
        %v358 = vpow.pop %v357
        %v359 = vmul.f32 %v319, 1.442695
        %v360 = vpow.pop %v359
        %v361 = vmul.f32 %v320, 1.442695
        %v362 = vpow.pop %v361
        %v363 = vmul.f32 %v321, 1.442695
        %v364 = vpow.pop %v363
        %v365 = vmul.f32 %v322, 1.442695
        %v366 = vpow.pop %v365
        %v367 = vmul.f32 %v323, 1.442695
        %v368 = vpow.pop %v367
        %v369 = vmul.f32 %v324, 1.442695
        %v370 = vpow.pop %v369
        %v371 = vmul.f32 %v325, 1.442695
        %v372 = vpow.pop %v371
        %v373 = vmul.f32 %v326, 1.442695
        %v374 = vpow.pop %v373
        %v375 = vmul.f32 %v327, 1.442695
        %v376 = vpow.pop %v375
        %v377 = vmul.f32 %v328, 1.442695
        %v378 = vpow.pop %v377
        %v379 = vmul.f32 %v329, 1.442695
        %v380 = vpow.pop %v379
        %v381 = vmul.f32 %v330, 1.442695
        %v382 = vpow.pop %v381
        %v383 = vmul.f32 %v331, 1.442695
        %v384 = vpow.pop %v383
        %v385 = vmul.f32 %v332, 1.442695
        %v386 = vpow.pop %v385
        %v387 = vmul.f32 %v333, 1.442695
        %v388 = vpow.pop %v387
        %v389 = vmul.f32 %v334, 1.442695
        %v390 = vpow.pop %v389
        %v391 = vmul.f32 %v335, 1.442695
        %v392 = vpow.pop %v391
        %v393 = vmul.f32 %v336, 1.442695
        %v394 = vpow.pop %v393
        %v395 = vmul.f32 %v337, 1.442695
        %v396 = vpow.pop %v395
        %v397 = vmul.f32 %v338, 1.442695
        %v398 = vpow.pop %v397
        %v399 = vmul.f32 %v339, 1.442695
        %v400 = vpow.pop %v399
        %v401 = vmul.f32 %v340, 1.442695
        %v402 = vpow.pop %v401
        %v403 = vmul.f32 %v341, 1.442695
        %v404 = vpow.pop %v403
        %v405 = vmul.f32 %v342, 1.442695
        %v406 = vpow.pop %v405
        %v407 = vld [vmem:[#allocation2] sm:$0xff]
        %vm408 = vcmask 523264
        %v410 = vsel %vm408, %v407, 0
        %v412 = vand.u32 %v346, 4294901760
        %413 = vmatprep.subr.mxu0 %v412
        %v414 = vand.u32 %v344, 4294901760
        %415 = vmatpush1.msra.mxu0 %v414
        %v416 = vand.u32 %v354, 4294901760
        %417 = vmatprep.subr.mxu0 %v416
        %v418 = vand.u32 %v352, 4294901760
        %419 = vmatpush1.msra.mxu0 %v418
        %v420 = vand.u32 %v362, 4294901760
        %421 = vmatprep.subr.mxu0 %v420
        %v422 = vand.u32 %v360, 4294901760
        %423 = vmatpush1.msra.mxu0 %v422
        %v424 = vand.u32 %v370, 4294901760
        %425 = vmatprep.subr.mxu0 %v424
        %v426 = vand.u32 %v368, 4294901760
        %427 = vmatpush1.msra.mxu0 %v426
        %v428 = vand.u32 %v378, 4294901760
        %429 = vmatprep.subr.mxu0 %v428
        %v430 = vand.u32 %v376, 4294901760
        %431 = vmatpush1.msra.mxu0 %v430
        %v432 = vand.u32 %v386, 4294901760
        %433 = vmatprep.subr.mxu0 %v432
        %v434 = vand.u32 %v384, 4294901760
        %435 = vmatpush1.msra.mxu0 %v434
        %v436 = vand.u32 %v394, 4294901760
        %437 = vmatprep.subr.mxu0 %v436
        %v438 = vand.u32 %v392, 4294901760
        %439 = vmatpush1.msra.mxu0 %v438
        %v440 = vand.u32 %v402, 4294901760
        %441 = vmatprep.subr.mxu0 %v440
        %v442 = vand.u32 %v400, 4294901760
        %443 = vmatpush1.msra.mxu0 %v442
        %444 = vmatprep.subr.mxu0 0.0
        %445 = vmatpush1.msra.mxu0 0.0
        %446 = vmatprep.subr.mxu0 0.0
        %447 = vmatpush1.msra.mxu0 0.0
        %448 = vmatprep.subr.mxu0 0.0
        %449 = vmatpush1.msra.mxu0 0.0
        %450 = vmatprep.subr.mxu0 0.0
        %451 = vmatpush1.msra.mxu0 0.0
        %452 = vmatprep.subr.mxu0 0.0
        %453 = vmatpush1.msra.mxu0 0.0
        %454 = vmatprep.subr.mxu0 0.0
        %455 = vmatpush1.msra.mxu0 0.0
        %456 = vmatprep.subr.mxu0 0.0
        %457 = vmatpush1.msra.mxu0 0.0
        %458 = vmatprep.subr.mxu0 0.0
        %459 = vmatpush1.msra.mxu0 0.0
        %460 = vmatprep.subr.mxu0 0.0
        %461 = vmatpush1.msra.mxu0 0.0
        %462 = vmatprep.subr.mxu0 0.0
        %463 = vmatpush1.msra.mxu0 0.0
        %464 = vmatprep.subr.mxu0 0.0
        %465 = vmatpush1.msra.mxu0 0.0
        %466 = vmatprep.subr.mxu0 0.0
        %467 = vmatpush1.msra.mxu0 0.0
        %468 = vmatprep.subr.mxu0 0.0
        %469 = vmatpush1.msra.mxu0 0.0
        %470 = vmatprep.subr.mxu0 0.0
        %471 = vmatpush1.msra.mxu0 0.0
        %472 = vmatprep.subr.mxu0 0.0
        %473 = vmatpush1.msra.mxu0 0.0
        %474 = vmatprep.subr.mxu0 0.0
        %475 = vmatpush1.msra.mxu0 0.0
        %476 = vmatprep.subr.mxu0 0.0
        %477 = vmatpush1.msra.mxu0 0.0
        %478 = vmatprep.subr.mxu0 0.0
        %479 = vmatpush1.msra.mxu0 0.0
        %480 = vmatprep.subr.mxu0 0.0
        %481 = vmatpush1.msra.mxu0 0.0
        %482 = vmatprep.subr.mxu0 0.0
        %483 = vmatpush1.msra.mxu0 0.0
        %484 = vmatprep.subr.mxu0 0.0
        %485 = vmatpush1.msra.mxu0 0.0
        %486 = vmatprep.subr.mxu0 0.0
        %487 = vmatpush1.msra.mxu0 0.0
        %488 = vmatprep.subr.mxu0 0.0
        %489 = vmatpush1.msra.mxu0 0.0
        %490 = vmatprep.subr.mxu0 0.0
        %491 = vmatpush1.msra.mxu0 0.0
        %492 = vmatprep.mubr.f32.mxu0 0.0
        %v493 = vand.u32 %v410, 4294901760
        %v494 = vsub.f32 %v410, %v493
        %v495 = vand.u32 %v494, 4294901760
        %v496 = vsub.f32 %v494, %v495
        %v497 = vand.u32 %v496, 4294901760
        %498 = vmatmul.mubr.f32.gmra.mrb[0].mxu0 %v497
        %v499 = vpop.f32.mrb[0].mxu0
        %v500 = vadd.f32 0.0, %v499
        %v501 = vpop.f32.mrb[0].mxu0
        %v502 = vadd.f32 0.0, %v501
        %503 = vdwg.mxu0
        %v504 = vand.u32 %v346, 4294901760
        %v505 = vsub.f32 %v346, %v504
        %v506 = vand.u32 %v505, 4294901760
        %v507 = vsub.f32 %v505, %v506
        %v508 = vand.u32 %v507, 4294901760
        %509 = vmatprep.subr.mxu0 %v508
        %v510 = vand.u32 %v344, 4294901760
        %v511 = vsub.f32 %v344, %v510
        %v512 = vand.u32 %v511, 4294901760
        %v513 = vsub.f32 %v511, %v512
        %v514 = vand.u32 %v513, 4294901760
        %515 = vmatpush1.msra.mxu0 %v514
        %v516 = vand.u32 %v354, 4294901760
        %v517 = vsub.f32 %v354, %v516
        %v518 = vand.u32 %v517, 4294901760
        %v519 = vsub.f32 %v517, %v518
        %v520 = vand.u32 %v519, 4294901760
        %521 = vmatprep.subr.mxu0 %v520
        %v522 = vand.u32 %v352, 4294901760
        %v523 = vsub.f32 %v352, %v522
        %v524 = vand.u32 %v523, 4294901760
        %v525 = vsub.f32 %v523, %v524
        %v526 = vand.u32 %v525, 4294901760
        %527 = vmatpush1.msra.mxu0 %v526
        %v528 = vand.u32 %v362, 4294901760
        %v529 = vsub.f32 %v362, %v528
        %v530 = vand.u32 %v529, 4294901760
        %v531 = vsub.f32 %v529, %v530
        %v532 = vand.u32 %v531, 4294901760
        %533 = vmatprep.subr.mxu0 %v532
        %v534 = vand.u32 %v360, 4294901760
        %v535 = vsub.f32 %v360, %v534
        %v536 = vand.u32 %v535, 4294901760
        %v537 = vsub.f32 %v535, %v536
        %v538 = vand.u32 %v537, 4294901760
        %539 = vmatpush1.msra.mxu0 %v538
        %v540 = vand.u32 %v370, 4294901760
        %v541 = vsub.f32 %v370, %v540
        %v542 = vand.u32 %v541, 4294901760
        %v543 = vsub.f32 %v541, %v542
        %v544 = vand.u32 %v543, 4294901760
        %545 = vmatprep.subr.mxu0 %v544
        %v546 = vand.u32 %v368, 4294901760
        %v547 = vsub.f32 %v368, %v546
        %v548 = vand.u32 %v547, 4294901760
        %v549 = vsub.f32 %v547, %v548
        %v550 = vand.u32 %v549, 4294901760
        %551 = vmatpush1.msra.mxu0 %v550
        %v552 = vand.u32 %v378, 4294901760
        %v553 = vsub.f32 %v378, %v552
        %v554 = vand.u32 %v553, 4294901760
        %v555 = vsub.f32 %v553, %v554
        %v556 = vand.u32 %v555, 4294901760
        %557 = vmatprep.subr.mxu0 %v556
        %v558 = vand.u32 %v376, 4294901760
        %v559 = vsub.f32 %v376, %v558
        %v560 = vand.u32 %v559, 4294901760
        %v561 = vsub.f32 %v559, %v560
        %v562 = vand.u32 %v561, 4294901760
        %563 = vmatpush1.msra.mxu0 %v562
        %v564 = vand.u32 %v386, 4294901760
        %v565 = vsub.f32 %v386, %v564
        %v566 = vand.u32 %v565, 4294901760
        %v567 = vsub.f32 %v565, %v566
        %v568 = vand.u32 %v567, 4294901760
        %569 = vmatprep.subr.mxu0 %v568
        %v570 = vand.u32 %v384, 4294901760
        %v571 = vsub.f32 %v384, %v570
        %v572 = vand.u32 %v571, 4294901760
        %v573 = vsub.f32 %v571, %v572
        %v574 = vand.u32 %v573, 4294901760
        %575 = vmatpush1.msra.mxu0 %v574
        %v576 = vand.u32 %v394, 4294901760
        %v577 = vsub.f32 %v394, %v576
        %v578 = vand.u32 %v577, 4294901760
        %v579 = vsub.f32 %v577, %v578
        %v580 = vand.u32 %v579, 4294901760
        %581 = vmatprep.subr.mxu0 %v580
        %v582 = vand.u32 %v392, 4294901760
        %v583 = vsub.f32 %v392, %v582
        %v584 = vand.u32 %v583, 4294901760
        %v585 = vsub.f32 %v583, %v584
        %v586 = vand.u32 %v585, 4294901760
        %587 = vmatpush1.msra.mxu0 %v586
        %v588 = vand.u32 %v402, 4294901760
        %v589 = vsub.f32 %v402, %v588
        %v590 = vand.u32 %v589, 4294901760
        %v591 = vsub.f32 %v589, %v590
        %v592 = vand.u32 %v591, 4294901760
        %593 = vmatprep.subr.mxu0 %v592
        %v594 = vand.u32 %v400, 4294901760
        %v595 = vsub.f32 %v400, %v594
        %v596 = vand.u32 %v595, 4294901760
        %v597 = vsub.f32 %v595, %v596
        %v598 = vand.u32 %v597, 4294901760
        %599 = vmatpush1.msra.mxu0 %v598
        %600 = vmatprep.subr.mxu0 0.0
        %601 = vmatpush1.msra.mxu0 0.0
        %602 = vmatprep.subr.mxu0 0.0
        %603 = vmatpush1.msra.mxu0 0.0
        %604 = vmatprep.subr.mxu0 0.0
        %605 = vmatpush1.msra.mxu0 0.0
        %606 = vmatprep.subr.mxu0 0.0
        %607 = vmatpush1.msra.mxu0 0.0
        %608 = vmatprep.subr.mxu0 0.0
        %609 = vmatpush1.msra.mxu0 0.0
        %610 = vmatprep.subr.mxu0 0.0
        %611 = vmatpush1.msra.mxu0 0.0
        %612 = vmatprep.subr.mxu0 0.0
        %613 = vmatpush1.msra.mxu0 0.0
        %614 = vmatprep.subr.mxu0 0.0
        %615 = vmatpush1.msra.mxu0 0.0
        %616 = vmatprep.subr.mxu0 0.0
        %617 = vmatpush1.msra.mxu0 0.0
        %618 = vmatprep.subr.mxu0 0.0
        %619 = vmatpush1.msra.mxu0 0.0
        %620 = vmatprep.subr.mxu0 0.0
        %621 = vmatpush1.msra.mxu0 0.0
        %622 = vmatprep.subr.mxu0 0.0
        %623 = vmatpush1.msra.mxu0 0.0
        %624 = vmatprep.subr.mxu0 0.0
        %625 = vmatpush1.msra.mxu0 0.0
        %626 = vmatprep.subr.mxu0 0.0
        %627 = vmatpush1.msra.mxu0 0.0
        %628 = vmatprep.subr.mxu0 0.0
        %629 = vmatpush1.msra.mxu0 0.0
        %630 = vmatprep.subr.mxu0 0.0
        %631 = vmatpush1.msra.mxu0 0.0
        %632 = vmatprep.subr.mxu0 0.0
        %633 = vmatpush1.msra.mxu0 0.0
        %634 = vmatprep.subr.mxu0 0.0
        %635 = vmatpush1.msra.mxu0 0.0
        %636 = vmatprep.subr.mxu0 0.0
        %637 = vmatpush1.msra.mxu0 0.0
        %638 = vmatprep.subr.mxu0 0.0
        %639 = vmatpush1.msra.mxu0 0.0
        %640 = vmatprep.subr.mxu0 0.0
        %641 = vmatpush1.msra.mxu0 0.0
        %642 = vmatprep.subr.mxu0 0.0
        %643 = vmatpush1.msra.mxu0 0.0
        %644 = vmatprep.subr.mxu0 0.0
        %645 = vmatpush1.msra.mxu0 0.0
        %646 = vmatprep.subr.mxu0 0.0
        %647 = vmatpush1.msra.mxu0 0.0
        %648 = vmatprep.mubr.f32.mxu0 0.0
        %v649 = vand.u32 %v410, 4294901760
        %650 = vmatmul.mubr.f32.gmra.mrb[0].mxu0 %v649
        %v651 = vpop.f32.mrb[0].mxu0
        %v652 = vadd.f32 %v500, %v651
        %v653 = vpop.f32.mrb[0].mxu0
        %v654 = vadd.f32 %v502, %v653
        %655 = vdwg.mxu0
        %v656 = vand.u32 %v346, 4294901760
        %v657 = vsub.f32 %v346, %v656
        %658 = vmatprep.subr.mxu0 %v657
        %v659 = vand.u32 %v344, 4294901760
        %v660 = vsub.f32 %v344, %v659
        %661 = vmatpush1.msra.mxu0 %v660
        %v662 = vand.u32 %v354, 4294901760
        %v663 = vsub.f32 %v354, %v662
        %664 = vmatprep.subr.mxu0 %v663
        %v665 = vand.u32 %v352, 4294901760
        %v666 = vsub.f32 %v352, %v665
        %667 = vmatpush1.msra.mxu0 %v666
        %v668 = vand.u32 %v362, 4294901760
        %v669 = vsub.f32 %v362, %v668
        %670 = vmatprep.subr.mxu0 %v669
        %v671 = vand.u32 %v360, 4294901760
        %v672 = vsub.f32 %v360, %v671
        %673 = vmatpush1.msra.mxu0 %v672
        %v674 = vand.u32 %v370, 4294901760
        %v675 = vsub.f32 %v370, %v674
        %676 = vmatprep.subr.mxu0 %v675
        %v677 = vand.u32 %v368, 4294901760
        %v678 = vsub.f32 %v368, %v677
        %679 = vmatpush1.msra.mxu0 %v678
        %v680 = vand.u32 %v378, 4294901760
        %v681 = vsub.f32 %v378, %v680
        %682 = vmatprep.subr.mxu0 %v681
        %v683 = vand.u32 %v376, 4294901760
        %v684 = vsub.f32 %v376, %v683
        %685 = vmatpush1.msra.mxu0 %v684
        %v686 = vand.u32 %v386, 4294901760
        %v687 = vsub.f32 %v386, %v686
        %688 = vmatprep.subr.mxu0 %v687
        %v689 = vand.u32 %v384, 4294901760
        %v690 = vsub.f32 %v384, %v689
        %691 = vmatpush1.msra.mxu0 %v690
        %v692 = vand.u32 %v394, 4294901760
        %v693 = vsub.f32 %v394, %v692
        %694 = vmatprep.subr.mxu0 %v693
        %v695 = vand.u32 %v392, 4294901760
        %v696 = vsub.f32 %v392, %v695
        %697 = vmatpush1.msra.mxu0 %v696
        %v698 = vand.u32 %v402, 4294901760
        %v699 = vsub.f32 %v402, %v698
        %700 = vmatprep.subr.mxu0 %v699
        %v701 = vand.u32 %v400, 4294901760
        %v702 = vsub.f32 %v400, %v701
        %703 = vmatpush1.msra.mxu0 %v702
        %704 = vmatprep.subr.mxu0 0.0
        %705 = vmatpush1.msra.mxu0 0.0
        %706 = vmatprep.subr.mxu0 0.0
        %707 = vmatpush1.msra.mxu0 0.0
        %708 = vmatprep.subr.mxu0 0.0
        %709 = vmatpush1.msra.mxu0 0.0
        %710 = vmatprep.subr.mxu0 0.0
        %711 = vmatpush1.msra.mxu0 0.0
        %712 = vmatprep.subr.mxu0 0.0
        %713 = vmatpush1.msra.mxu0 0.0
        %714 = vmatprep.subr.mxu0 0.0
        %715 = vmatpush1.msra.mxu0 0.0
        %716 = vmatprep.subr.mxu0 0.0
        %717 = vmatpush1.msra.mxu0 0.0
        %718 = vmatprep.subr.mxu0 0.0
        %719 = vmatpush1.msra.mxu0 0.0
        %720 = vmatprep.subr.mxu0 0.0
        %721 = vmatpush1.msra.mxu0 0.0
        %722 = vmatprep.subr.mxu0 0.0
        %723 = vmatpush1.msra.mxu0 0.0
        %724 = vmatprep.subr.mxu0 0.0
        %725 = vmatpush1.msra.mxu0 0.0
        %726 = vmatprep.subr.mxu0 0.0
        %727 = vmatpush1.msra.mxu0 0.0
        %728 = vmatprep.subr.mxu0 0.0
        %729 = vmatpush1.msra.mxu0 0.0
        %730 = vmatprep.subr.mxu0 0.0
        %731 = vmatpush1.msra.mxu0 0.0
        %732 = vmatprep.subr.mxu0 0.0
        %733 = vmatpush1.msra.mxu0 0.0
        %734 = vmatprep.subr.mxu0 0.0
        %735 = vmatpush1.msra.mxu0 0.0
        %736 = vmatprep.subr.mxu0 0.0
        %737 = vmatpush1.msra.mxu0 0.0
        %738 = vmatprep.subr.mxu0 0.0
        %739 = vmatpush1.msra.mxu0 0.0
        %740 = vmatprep.subr.mxu0 0.0
        %741 = vmatpush1.msra.mxu0 0.0
        %742 = vmatprep.subr.mxu0 0.0
        %743 = vmatpush1.msra.mxu0 0.0
        %744 = vmatprep.subr.mxu0 0.0
        %745 = vmatpush1.msra.mxu0 0.0
        %746 = vmatprep.subr.mxu0 0.0
        %747 = vmatpush1.msra.mxu0 0.0
        %748 = vmatprep.subr.mxu0 0.0
        %749 = vmatpush1.msra.mxu0 0.0
        %750 = vmatprep.subr.mxu0 0.0
        %751 = vmatpush1.msra.mxu0 0.0
        %752 = vmatprep.mubr.f32.mxu0 0.0
        %v753 = vand.u32 %v410, 4294901760
        %v754 = vsub.f32 %v410, %v753
        %755 = vmatmul.mubr.f32.gmra.mrb[0].mxu0 %v754
        %v756 = vpop.f32.mrb[0].mxu0
        %v757 = vadd.f32 %v652, %v756
        %v758 = vpop.f32.mrb[0].mxu0
        %v759 = vadd.f32 %v654, %v758
        %760 = vdwg.mxu0
        %v761 = vand.u32 %v346, 4294901760
        %762 = vmatprep.subr.mxu0 %v761
        %v763 = vand.u32 %v344, 4294901760
        %764 = vmatpush1.msra.mxu0 %v763
        %v765 = vand.u32 %v354, 4294901760
        %766 = vmatprep.subr.mxu0 %v765
        %v767 = vand.u32 %v352, 4294901760
        %768 = vmatpush1.msra.mxu0 %v767
        %v769 = vand.u32 %v362, 4294901760
        %770 = vmatprep.subr.mxu0 %v769
        %v771 = vand.u32 %v360, 4294901760
        %772 = vmatpush1.msra.mxu0 %v771
        %v773 = vand.u32 %v370, 4294901760
        %774 = vmatprep.subr.mxu0 %v773
        %v775 = vand.u32 %v368, 4294901760
        %776 = vmatpush1.msra.mxu0 %v775
        %v777 = vand.u32 %v378, 4294901760
        %778 = vmatprep.subr.mxu0 %v777
        %v779 = vand.u32 %v376, 4294901760
        %780 = vmatpush1.msra.mxu0 %v779
        %v781 = vand.u32 %v386, 4294901760
        %782 = vmatprep.subr.mxu0 %v781
        %v783 = vand.u32 %v384, 4294901760
        %784 = vmatpush1.msra.mxu0 %v783
        %v785 = vand.u32 %v394, 4294901760
        %786 = vmatprep.subr.mxu0 %v785
        %v787 = vand.u32 %v392, 4294901760
        %788 = vmatpush1.msra.mxu0 %v787
        %v789 = vand.u32 %v402, 4294901760
        %790 = vmatprep.subr.mxu0 %v789
        %v791 = vand.u32 %v400, 4294901760
        %792 = vmatpush1.msra.mxu0 %v791
        %793 = vmatprep.subr.mxu0 0.0
        %794 = vmatpush1.msra.mxu0 0.0
        %795 = vmatprep.subr.mxu0 0.0
        %796 = vmatpush1.msra.mxu0 0.0
        %797 = vmatprep.subr.mxu0 0.0
        %798 = vmatpush1.msra.mxu0 0.0
        %799 = vmatprep.subr.mxu0 0.0
        %800 = vmatpush1.msra.mxu0 0.0
        %801 = vmatprep.subr.mxu0 0.0
        %802 = vmatpush1.msra.mxu0 0.0
        %803 = vmatprep.subr.mxu0 0.0
        %804 = vmatpush1.msra.mxu0 0.0
        %805 = vmatprep.subr.mxu0 0.0
        %806 = vmatpush1.msra.mxu0 0.0
        %807 = vmatprep.subr.mxu0 0.0
        %808 = vmatpush1.msra.mxu0 0.0
        %809 = vmatprep.subr.mxu0 0.0
        %810 = vmatpush1.msra.mxu0 0.0
        %811 = vmatprep.subr.mxu0 0.0
        %812 = vmatpush1.msra.mxu0 0.0
        %813 = vmatprep.subr.mxu0 0.0
        %814 = vmatpush1.msra.mxu0 0.0
        %815 = vmatprep.subr.mxu0 0.0
        %816 = vmatpush1.msra.mxu0 0.0
        %817 = vmatprep.subr.mxu0 0.0
        %818 = vmatpush1.msra.mxu0 0.0
        %819 = vmatprep.subr.mxu0 0.0
        %820 = vmatpush1.msra.mxu0 0.0
        %821 = vmatprep.subr.mxu0 0.0
        %822 = vmatpush1.msra.mxu0 0.0
        %823 = vmatprep.subr.mxu0 0.0
        %824 = vmatpush1.msra.mxu0 0.0
        %825 = vmatprep.subr.mxu0 0.0
        %826 = vmatpush1.msra.mxu0 0.0
        %827 = vmatprep.subr.mxu0 0.0
        %828 = vmatpush1.msra.mxu0 0.0
        %829 = vmatprep.subr.mxu0 0.0
        %830 = vmatpush1.msra.mxu0 0.0
        %831 = vmatprep.subr.mxu0 0.0
        %832 = vmatpush1.msra.mxu0 0.0
        %833 = vmatprep.subr.mxu0 0.0
        %834 = vmatpush1.msra.mxu0 0.0
        %835 = vmatprep.subr.mxu0 0.0
        %836 = vmatpush1.msra.mxu0 0.0
        %837 = vmatprep.subr.mxu0 0.0
        %838 = vmatpush1.msra.mxu0 0.0
        %839 = vmatprep.subr.mxu0 0.0
        %840 = vmatpush1.msra.mxu0 0.0
        %841 = vmatprep.mubr.f32.mxu0 0.0
        %v842 = vand.u32 %v410, 4294901760
        %v843 = vsub.f32 %v410, %v842
        %v844 = vand.u32 %v843, 4294901760
        %845 = vmatmul.mubr.f32.gmra.mrb[0].mxu0 %v844
        %v846 = vpop.f32.mrb[0].mxu0
        %v847 = vadd.f32 %v757, %v846
        %v848 = vpop.f32.mrb[0].mxu0
        %v849 = vadd.f32 %v759, %v848
        %850 = vdwg.mxu0
        %v851 = vand.u32 %v346, 4294901760
        %v852 = vsub.f32 %v346, %v851
        %v853 = vand.u32 %v852, 4294901760
        %854 = vmatprep.subr.mxu0 %v853
        %v855 = vand.u32 %v344, 4294901760
        %v856 = vsub.f32 %v344, %v855
        %v857 = vand.u32 %v856, 4294901760
        %858 = vmatpush1.msra.mxu0 %v857
        %v859 = vand.u32 %v354, 4294901760
        %v860 = vsub.f32 %v354, %v859
        %v861 = vand.u32 %v860, 4294901760
        %862 = vmatprep.subr.mxu0 %v861
        %v863 = vand.u32 %v352, 4294901760
        %v864 = vsub.f32 %v352, %v863
        %v865 = vand.u32 %v864, 4294901760
        %866 = vmatpush1.msra.mxu0 %v865
        %v867 = vand.u32 %v362, 4294901760
        %v868 = vsub.f32 %v362, %v867
        %v869 = vand.u32 %v868, 4294901760
        %870 = vmatprep.subr.mxu0 %v869
        %v871 = vand.u32 %v360, 4294901760
        %v872 = vsub.f32 %v360, %v871
        %v873 = vand.u32 %v872, 4294901760
        %874 = vmatpush1.msra.mxu0 %v873
        %v875 = vand.u32 %v370, 4294901760
        %v876 = vsub.f32 %v370, %v875
        %v877 = vand.u32 %v876, 4294901760
        %878 = vmatprep.subr.mxu0 %v877
        %v879 = vand.u32 %v368, 4294901760
        %v880 = vsub.f32 %v368, %v879
        %v881 = vand.u32 %v880, 4294901760
        %882 = vmatpush1.msra.mxu0 %v881
        %v883 = vand.u32 %v378, 4294901760
        %v884 = vsub.f32 %v378, %v883
        %v885 = vand.u32 %v884, 4294901760
        %886 = vmatprep.subr.mxu0 %v885
        %v887 = vand.u32 %v376, 4294901760
        %v888 = vsub.f32 %v376, %v887
        %v889 = vand.u32 %v888, 4294901760
        %890 = vmatpush1.msra.mxu0 %v889
        %v891 = vand.u32 %v386, 4294901760
        %v892 = vsub.f32 %v386, %v891
        %v893 = vand.u32 %v892, 4294901760
        %894 = vmatprep.subr.mxu0 %v893
        %v895 = vand.u32 %v384, 4294901760
        %v896 = vsub.f32 %v384, %v895
        %v897 = vand.u32 %v896, 4294901760
        %898 = vmatpush1.msra.mxu0 %v897
        %v899 = vand.u32 %v394, 4294901760
        %v900 = vsub.f32 %v394, %v899
        %v901 = vand.u32 %v900, 4294901760
        %902 = vmatprep.subr.mxu0 %v901
        %v903 = vand.u32 %v392, 4294901760
        %v904 = vsub.f32 %v392, %v903
        %v905 = vand.u32 %v904, 4294901760
        %906 = vmatpush1.msra.mxu0 %v905
        %v907 = vand.u32 %v402, 4294901760
        %v908 = vsub.f32 %v402, %v907
        %v909 = vand.u32 %v908, 4294901760
        %910 = vmatprep.subr.mxu0 %v909
        %v911 = vand.u32 %v400, 4294901760
        %v912 = vsub.f32 %v400, %v911
        %v913 = vand.u32 %v912, 4294901760
        %914 = vmatpush1.msra.mxu0 %v913
        %915 = vmatprep.subr.mxu0 0.0
        %916 = vmatpush1.msra.mxu0 0.0
        %917 = vmatprep.subr.mxu0 0.0
        %918 = vmatpush1.msra.mxu0 0.0
        %919 = vmatprep.subr.mxu0 0.0
        %920 = vmatpush1.msra.mxu0 0.0
        %921 = vmatprep.subr.mxu0 0.0
        %922 = vmatpush1.msra.mxu0 0.0
        %923 = vmatprep.subr.mxu0 0.0
        %924 = vmatpush1.msra.mxu0 0.0
        %925 = vmatprep.subr.mxu0 0.0
        %926 = vmatpush1.msra.mxu0 0.0
        %927 = vmatprep.subr.mxu0 0.0
        %928 = vmatpush1.msra.mxu0 0.0
        %929 = vmatprep.subr.mxu0 0.0
        %930 = vmatpush1.msra.mxu0 0.0
        %931 = vmatprep.subr.mxu0 0.0
        %932 = vmatpush1.msra.mxu0 0.0
        %933 = vmatprep.subr.mxu0 0.0
        %934 = vmatpush1.msra.mxu0 0.0
        %935 = vmatprep.subr.mxu0 0.0
        %936 = vmatpush1.msra.mxu0 0.0
        %937 = vmatprep.subr.mxu0 0.0
        %938 = vmatpush1.msra.mxu0 0.0
        %939 = vmatprep.subr.mxu0 0.0
        %940 = vmatpush1.msra.mxu0 0.0
        %941 = vmatprep.subr.mxu0 0.0
        %942 = vmatpush1.msra.mxu0 0.0
        %943 = vmatprep.subr.mxu0 0.0
        %944 = vmatpush1.msra.mxu0 0.0
        %945 = vmatprep.subr.mxu0 0.0
        %946 = vmatpush1.msra.mxu0 0.0
        %947 = vmatprep.subr.mxu0 0.0
        %948 = vmatpush1.msra.mxu0 0.0
        %949 = vmatprep.subr.mxu0 0.0
        %950 = vmatpush1.msra.mxu0 0.0
        %951 = vmatprep.subr.mxu0 0.0
        %952 = vmatpush1.msra.mxu0 0.0
        %953 = vmatprep.subr.mxu0 0.0
        %954 = vmatpush1.msra.mxu0 0.0
        %955 = vmatprep.subr.mxu0 0.0
        %956 = vmatpush1.msra.mxu0 0.0
        %957 = vmatprep.subr.mxu0 0.0
        %958 = vmatpush1.msra.mxu0 0.0
        %959 = vmatprep.subr.mxu0 0.0
        %960 = vmatpush1.msra.mxu0 0.0
        %961 = vmatprep.subr.mxu0 0.0
        %962 = vmatpush1.msra.mxu0 0.0
        %963 = vmatprep.mubr.f32.mxu0 0.0
        %v964 = vand.u32 %v410, 4294901760
        %965 = vmatmul.mubr.f32.gmra.mrb[0].mxu0 %v964
        %v966 = vpop.f32.mrb[0].mxu0
        %v967 = vadd.f32 %v847, %v966
        %v968 = vpop.f32.mrb[0].mxu0
        %v969 = vadd.f32 %v849, %v968
        %970 = vdwg.mxu0
        %v971 = vand.u32 %v346, 4294901760
        %972 = vmatprep.subr.mxu0 %v971
        %v973 = vand.u32 %v344, 4294901760
        %974 = vmatpush1.msra.mxu0 %v973
        %v975 = vand.u32 %v354, 4294901760
        %976 = vmatprep.subr.mxu0 %v975
        %v977 = vand.u32 %v352, 4294901760
        %978 = vmatpush1.msra.mxu0 %v977
        %v979 = vand.u32 %v362, 4294901760
        %980 = vmatprep.subr.mxu0 %v979
        %v981 = vand.u32 %v360, 4294901760
        %982 = vmatpush1.msra.mxu0 %v981
        %v983 = vand.u32 %v370, 4294901760
        %984 = vmatprep.subr.mxu0 %v983
        %v985 = vand.u32 %v368, 4294901760
        %986 = vmatpush1.msra.mxu0 %v985
        %v987 = vand.u32 %v378, 4294901760
        %988 = vmatprep.subr.mxu0 %v987
        %v989 = vand.u32 %v376, 4294901760
        %990 = vmatpush1.msra.mxu0 %v989
        %v991 = vand.u32 %v386, 4294901760
        %992 = vmatprep.subr.mxu0 %v991
        %v993 = vand.u32 %v384, 4294901760
        %994 = vmatpush1.msra.mxu0 %v993
        %v995 = vand.u32 %v394, 4294901760
        %996 = vmatprep.subr.mxu0 %v995
        %v997 = vand.u32 %v392, 4294901760
        %998 = vmatpush1.msra.mxu0 %v997
        %v999 = vand.u32 %v402, 4294901760
        %1000 = vmatprep.subr.mxu0 %v999
        %v1001 = vand.u32 %v400, 4294901760
        %1002 = vmatpush1.msra.mxu0 %v1001
        %1003 = vmatprep.subr.mxu0 0.0
        %1004 = vmatpush1.msra.mxu0 0.0
        %1005 = vmatprep.subr.mxu0 0.0
        %1006 = vmatpush1.msra.mxu0 0.0
        %1007 = vmatprep.subr.mxu0 0.0
        %1008 = vmatpush1.msra.mxu0 0.0
        %1009 = vmatprep.subr.mxu0 0.0
        %1010 = vmatpush1.msra.mxu0 0.0
        %1011 = vmatprep.subr.mxu0 0.0
        %1012 = vmatpush1.msra.mxu0 0.0
        %1013 = vmatprep.subr.mxu0 0.0
        %1014 = vmatpush1.msra.mxu0 0.0
        %1015 = vmatprep.subr.mxu0 0.0
        %1016 = vmatpush1.msra.mxu0 0.0
        %1017 = vmatprep.subr.mxu0 0.0
        %1018 = vmatpush1.msra.mxu0 0.0
        %1019 = vmatprep.subr.mxu0 0.0
        %1020 = vmatpush1.msra.mxu0 0.0
        %1021 = vmatprep.subr.mxu0 0.0
        %1022 = vmatpush1.msra.mxu0 0.0
        %1023 = vmatprep.subr.mxu0 0.0
        %1024 = vmatpush1.msra.mxu0 0.0
        %1025 = vmatprep.subr.mxu0 0.0
        %1026 = vmatpush1.msra.mxu0 0.0
        %1027 = vmatprep.subr.mxu0 0.0
        %1028 = vmatpush1.msra.mxu0 0.0
        %1029 = vmatprep.subr.mxu0 0.0
        %1030 = vmatpush1.msra.mxu0 0.0
        %1031 = vmatprep.subr.mxu0 0.0
        %1032 = vmatpush1.msra.mxu0 0.0
        %1033 = vmatprep.subr.mxu0 0.0
        %1034 = vmatpush1.msra.mxu0 0.0
        %1035 = vmatprep.subr.mxu0 0.0
        %1036 = vmatpush1.msra.mxu0 0.0
        %1037 = vmatprep.subr.mxu0 0.0
        %1038 = vmatpush1.msra.mxu0 0.0
        %1039 = vmatprep.subr.mxu0 0.0
        %1040 = vmatpush1.msra.mxu0 0.0
        %1041 = vmatprep.subr.mxu0 0.0
        %1042 = vmatpush1.msra.mxu0 0.0
        %1043 = vmatprep.subr.mxu0 0.0
        %1044 = vmatpush1.msra.mxu0 0.0
        %1045 = vmatprep.subr.mxu0 0.0
        %1046 = vmatpush1.msra.mxu0 0.0
        %1047 = vmatprep.subr.mxu0 0.0
        %1048 = vmatpush1.msra.mxu0 0.0
        %1049 = vmatprep.subr.mxu0 0.0
        %1050 = vmatpush1.msra.mxu0 0.0
        %1051 = vmatprep.mubr.f32.mxu0 0.0
        %v1052 = vand.u32 %v410, 4294901760
        %1053 = vmatmul.mubr.f32.gmra.mrb[0].mxu0 %v1052
        %v1054 = vpop.f32.mrb[0].mxu0
        %v1055 = vadd.f32 %v967, %v1054
        %v1056 = vpop.f32.mrb[0].mxu0
        %v1057 = vadd.f32 %v969, %v1056
        %1058 = vdwg.mxu0
        %v1059 = vand.u32 %v350, 4294901760
        %1060 = vmatprep.subr.mxu0 %v1059
        %v1061 = vand.u32 %v348, 4294901760
        %1062 = vmatpush1.msra.mxu0 %v1061
        %v1063 = vand.u32 %v358, 4294901760
        %1064 = vmatprep.subr.mxu0 %v1063
        %v1065 = vand.u32 %v356, 4294901760
        %1066 = vmatpush1.msra.mxu0 %v1065
        %v1067 = vand.u32 %v366, 4294901760
        %1068 = vmatprep.subr.mxu0 %v1067
        %v1069 = vand.u32 %v364, 4294901760
        %1070 = vmatpush1.msra.mxu0 %v1069
        %v1071 = vand.u32 %v374, 4294901760
        %1072 = vmatprep.subr.mxu0 %v1071
        %v1073 = vand.u32 %v372, 4294901760
        %1074 = vmatpush1.msra.mxu0 %v1073
        %v1075 = vand.u32 %v382, 4294901760
        %1076 = vmatprep.subr.mxu0 %v1075
        %v1077 = vand.u32 %v380, 4294901760
        %1078 = vmatpush1.msra.mxu0 %v1077
        %v1079 = vand.u32 %v390, 4294901760
        %1080 = vmatprep.subr.mxu0 %v1079
        %v1081 = vand.u32 %v388, 4294901760
        %1082 = vmatpush1.msra.mxu0 %v1081
        %v1083 = vand.u32 %v398, 4294901760
        %1084 = vmatprep.subr.mxu0 %v1083
        %v1085 = vand.u32 %v396, 4294901760
        %1086 = vmatpush1.msra.mxu0 %v1085
        %v1087 = vand.u32 %v406, 4294901760
        %1088 = vmatprep.subr.mxu0 %v1087
        %v1089 = vand.u32 %v404, 4294901760
        %1090 = vmatpush1.msra.mxu0 %v1089
        %1091 = vmatprep.subr.mxu0 0.0
        %1092 = vmatpush1.msra.mxu0 0.0
        %1093 = vmatprep.subr.mxu0 0.0
        %1094 = vmatpush1.msra.mxu0 0.0
        %1095 = vmatprep.subr.mxu0 0.0
        %1096 = vmatpush1.msra.mxu0 0.0
        %1097 = vmatprep.subr.mxu0 0.0
        %1098 = vmatpush1.msra.mxu0 0.0
        %1099 = vmatprep.subr.mxu0 0.0
        %1100 = vmatpush1.msra.mxu0 0.0
        %1101 = vmatprep.subr.mxu0 0.0
        %1102 = vmatpush1.msra.mxu0 0.0
        %1103 = vmatprep.subr.mxu0 0.0
        %1104 = vmatpush1.msra.mxu0 0.0
        %1105 = vmatprep.subr.mxu0 0.0
        %1106 = vmatpush1.msra.mxu0 0.0
        %1107 = vmatprep.subr.mxu0 0.0
        %1108 = vmatpush1.msra.mxu0 0.0
        %1109 = vmatprep.subr.mxu0 0.0
        %1110 = vmatpush1.msra.mxu0 0.0
        %1111 = vmatprep.subr.mxu0 0.0
        %1112 = vmatpush1.msra.mxu0 0.0
        %1113 = vmatprep.subr.mxu0 0.0
        %1114 = vmatpush1.msra.mxu0 0.0
        %1115 = vmatprep.subr.mxu0 0.0
        %1116 = vmatpush1.msra.mxu0 0.0
        %1117 = vmatprep.subr.mxu0 0.0
        %1118 = vmatpush1.msra.mxu0 0.0
        %1119 = vmatprep.subr.mxu0 0.0
        %1120 = vmatpush1.msra.mxu0 0.0
        %1121 = vmatprep.subr.mxu0 0.0
        %1122 = vmatpush1.msra.mxu0 0.0
        %1123 = vmatprep.subr.mxu0 0.0
        %1124 = vmatpush1.msra.mxu0 0.0
        %1125 = vmatprep.subr.mxu0 0.0
        %1126 = vmatpush1.msra.mxu0 0.0
        %1127 = vmatprep.subr.mxu0 0.0
        %1128 = vmatpush1.msra.mxu0 0.0
        %1129 = vmatprep.subr.mxu0 0.0
        %1130 = vmatpush1.msra.mxu0 0.0
        %1131 = vmatprep.subr.mxu0 0.0
        %1132 = vmatpush1.msra.mxu0 0.0
        %1133 = vmatprep.subr.mxu0 0.0
        %1134 = vmatpush1.msra.mxu0 0.0
        %1135 = vmatprep.subr.mxu0 0.0
        %1136 = vmatpush1.msra.mxu0 0.0
        %1137 = vmatprep.subr.mxu0 0.0
        %1138 = vmatpush1.msra.mxu0 0.0
        %1139 = vmatprep.mubr.f32.mxu0 0.0
        %v1140 = vand.u32 %v410, 4294901760
        %v1141 = vsub.f32 %v410, %v1140
        %v1142 = vand.u32 %v1141, 4294901760
        %v1143 = vsub.f32 %v1141, %v1142
        %v1144 = vand.u32 %v1143, 4294901760
        %1145 = vmatmul.mubr.f32.gmra.mrb[0].mxu0 %v1144
        %v1146 = vpop.f32.mrb[0].mxu0
        %v1147 = vadd.f32 0.0, %v1146
        %v1148 = vpop.f32.mrb[0].mxu0
        %v1149 = vadd.f32 0.0, %v1148
        %1150 = vdwg.mxu0
        %v1151 = vand.u32 %v350, 4294901760
        %v1152 = vsub.f32 %v350, %v1151
        %v1153 = vand.u32 %v1152, 4294901760
        %v1154 = vsub.f32 %v1152, %v1153
        %v1155 = vand.u32 %v1154, 4294901760
        %1156 = vmatprep.subr.mxu0 %v1155
        %v1157 = vand.u32 %v348, 4294901760
        %v1158 = vsub.f32 %v348, %v1157
        %v1159 = vand.u32 %v1158, 4294901760
        %v1160 = vsub.f32 %v1158, %v1159
        %v1161 = vand.u32 %v1160, 4294901760
        %1162 = vmatpush1.msra.mxu0 %v1161
        %v1163 = vand.u32 %v358, 4294901760
        %v1164 = vsub.f32 %v358, %v1163
        %v1165 = vand.u32 %v1164, 4294901760
        %v1166 = vsub.f32 %v1164, %v1165
        %v1167 = vand.u32 %v1166, 4294901760
        %1168 = vmatprep.subr.mxu0 %v1167
        %v1169 = vand.u32 %v356, 4294901760
        %v1170 = vsub.f32 %v356, %v1169
        %v1171 = vand.u32 %v1170, 4294901760
        %v1172 = vsub.f32 %v1170, %v1171
        %v1173 = vand.u32 %v1172, 4294901760
        %1174 = vmatpush1.msra.mxu0 %v1173
        %v1175 = vand.u32 %v366, 4294901760
        %v1176 = vsub.f32 %v366, %v1175
        %v1177 = vand.u32 %v1176, 4294901760
        %v1178 = vsub.f32 %v1176, %v1177
        %v1179 = vand.u32 %v1178, 4294901760
        %1180 = vmatprep.subr.mxu0 %v1179
        %v1181 = vand.u32 %v364, 4294901760
        %v1182 = vsub.f32 %v364, %v1181
        %v1183 = vand.u32 %v1182, 4294901760
        %v1184 = vsub.f32 %v1182, %v1183
        %v1185 = vand.u32 %v1184, 4294901760
        %1186 = vmatpush1.msra.mxu0 %v1185
        %v1187 = vand.u32 %v374, 4294901760
        %v1188 = vsub.f32 %v374, %v1187
        %v1189 = vand.u32 %v1188, 4294901760
        %v1190 = vsub.f32 %v1188, %v1189
        %v1191 = vand.u32 %v1190, 4294901760
        %1192 = vmatprep.subr.mxu0 %v1191
        %v1193 = vand.u32 %v372, 4294901760
        %v1194 = vsub.f32 %v372, %v1193
        %v1195 = vand.u32 %v1194, 4294901760
        %v1196 = vsub.f32 %v1194, %v1195
        %v1197 = vand.u32 %v1196, 4294901760
        %1198 = vmatpush1.msra.mxu0 %v1197
        %v1199 = vand.u32 %v382, 4294901760
        %v1200 = vsub.f32 %v382, %v1199
        %v1201 = vand.u32 %v1200, 4294901760
        %v1202 = vsub.f32 %v1200, %v1201
        %v1203 = vand.u32 %v1202, 4294901760
        %1204 = vmatprep.subr.mxu0 %v1203
        %v1205 = vand.u32 %v380, 4294901760
        %v1206 = vsub.f32 %v380, %v1205
        %v1207 = vand.u32 %v1206, 4294901760
        %v1208 = vsub.f32 %v1206, %v1207
        %v1209 = vand.u32 %v1208, 4294901760
        %1210 = vmatpush1.msra.mxu0 %v1209
        %v1211 = vand.u32 %v390, 4294901760
        %v1212 = vsub.f32 %v390, %v1211
        %v1213 = vand.u32 %v1212, 4294901760
        %v1214 = vsub.f32 %v1212, %v1213
        %v1215 = vand.u32 %v1214, 4294901760
        %1216 = vmatprep.subr.mxu0 %v1215
        %v1217 = vand.u32 %v388, 4294901760
        %v1218 = vsub.f32 %v388, %v1217
        %v1219 = vand.u32 %v1218, 4294901760
        %v1220 = vsub.f32 %v1218, %v1219
        %v1221 = vand.u32 %v1220, 4294901760
        %1222 = vmatpush1.msra.mxu0 %v1221
        %v1223 = vand.u32 %v398, 4294901760
        %v1224 = vsub.f32 %v398, %v1223
        %v1225 = vand.u32 %v1224, 4294901760
        %v1226 = vsub.f32 %v1224, %v1225
        %v1227 = vand.u32 %v1226, 4294901760
        %1228 = vmatprep.subr.mxu0 %v1227
        %v1229 = vand.u32 %v396, 4294901760
        %v1230 = vsub.f32 %v396, %v1229
        %v1231 = vand.u32 %v1230, 4294901760
        %v1232 = vsub.f32 %v1230, %v1231
        %v1233 = vand.u32 %v1232, 4294901760
        %1234 = vmatpush1.msra.mxu0 %v1233
        %v1235 = vand.u32 %v406, 4294901760
        %v1236 = vsub.f32 %v406, %v1235
        %v1237 = vand.u32 %v1236, 4294901760
        %v1238 = vsub.f32 %v1236, %v1237
        %v1239 = vand.u32 %v1238, 4294901760
        %1240 = vmatprep.subr.mxu0 %v1239
        %v1241 = vand.u32 %v404, 4294901760
        %v1242 = vsub.f32 %v404, %v1241
        %v1243 = vand.u32 %v1242, 4294901760
        %v1244 = vsub.f32 %v1242, %v1243
        %v1245 = vand.u32 %v1244, 4294901760
        %1246 = vmatpush1.msra.mxu0 %v1245
        %1247 = vmatprep.subr.mxu0 0.0
        %1248 = vmatpush1.msra.mxu0 0.0
        %1249 = vmatprep.subr.mxu0 0.0
        %1250 = vmatpush1.msra.mxu0 0.0
        %1251 = vmatprep.subr.mxu0 0.0
        %1252 = vmatpush1.msra.mxu0 0.0
        %1253 = vmatprep.subr.mxu0 0.0
        %1254 = vmatpush1.msra.mxu0 0.0
        %1255 = vmatprep.subr.mxu0 0.0
        %1256 = vmatpush1.msra.mxu0 0.0
        %1257 = vmatprep.subr.mxu0 0.0
        %1258 = vmatpush1.msra.mxu0 0.0
        %1259 = vmatprep.subr.mxu0 0.0
        %1260 = vmatpush1.msra.mxu0 0.0
        %1261 = vmatprep.subr.mxu0 0.0
        %1262 = vmatpush1.msra.mxu0 0.0
        %1263 = vmatprep.subr.mxu0 0.0
        %1264 = vmatpush1.msra.mxu0 0.0
        %1265 = vmatprep.subr.mxu0 0.0
        %1266 = vmatpush1.msra.mxu0 0.0
        %1267 = vmatprep.subr.mxu0 0.0
        %1268 = vmatpush1.msra.mxu0 0.0
        %1269 = vmatprep.subr.mxu0 0.0
        %1270 = vmatpush1.msra.mxu0 0.0
        %1271 = vmatprep.subr.mxu0 0.0
        %1272 = vmatpush1.msra.mxu0 0.0
        %1273 = vmatprep.subr.mxu0 0.0
        %1274 = vmatpush1.msra.mxu0 0.0
        %1275 = vmatprep.subr.mxu0 0.0
        %1276 = vmatpush1.msra.mxu0 0.0
        %1277 = vmatprep.subr.mxu0 0.0
        %1278 = vmatpush1.msra.mxu0 0.0
        %1279 = vmatprep.subr.mxu0 0.0
        %1280 = vmatpush1.msra.mxu0 0.0
        %1281 = vmatprep.subr.mxu0 0.0
        %1282 = vmatpush1.msra.mxu0 0.0
        %1283 = vmatprep.subr.mxu0 0.0
        %1284 = vmatpush1.msra.mxu0 0.0
        %1285 = vmatprep.subr.mxu0 0.0
        %1286 = vmatpush1.msra.mxu0 0.0
        %1287 = vmatprep.subr.mxu0 0.0
        %1288 = vmatpush1.msra.mxu0 0.0
        %1289 = vmatprep.subr.mxu0 0.0
        %1290 = vmatpush1.msra.mxu0 0.0
        %1291 = vmatprep.subr.mxu0 0.0
        %1292 = vmatpush1.msra.mxu0 0.0
        %1293 = vmatprep.subr.mxu0 0.0
        %1294 = vmatpush1.msra.mxu0 0.0
        %1295 = vmatprep.mubr.f32.mxu0 0.0
        %v1296 = vand.u32 %v410, 4294901760
        %1297 = vmatmul.mubr.f32.gmra.mrb[0].mxu0 %v1296
        %v1298 = vpop.f32.mrb[0].mxu0
        %v1299 = vadd.f32 %v1147, %v1298
        %v1300 = vpop.f32.mrb[0].mxu0
        %v1301 = vadd.f32 %v1149, %v1300
        %1302 = vdwg.mxu0
        %v1303 = vand.u32 %v350, 4294901760
        %v1304 = vsub.f32 %v350, %v1303
        %1305 = vmatprep.subr.mxu0 %v1304
        %v1306 = vand.u32 %v348, 4294901760
        %v1307 = vsub.f32 %v348, %v1306
        %1308 = vmatpush1.msra.mxu0 %v1307
        %v1309 = vand.u32 %v358, 4294901760
        %v1310 = vsub.f32 %v358, %v1309
        %1311 = vmatprep.subr.mxu0 %v1310
        %v1312 = vand.u32 %v356, 4294901760
        %v1313 = vsub.f32 %v356, %v1312
        %1314 = vmatpush1.msra.mxu0 %v1313
        %v1315 = vand.u32 %v366, 4294901760
        %v1316 = vsub.f32 %v366, %v1315
        %1317 = vmatprep.subr.mxu0 %v1316
        %v1318 = vand.u32 %v364, 4294901760
        %v1319 = vsub.f32 %v364, %v1318
        %1320 = vmatpush1.msra.mxu0 %v1319
        %v1321 = vand.u32 %v374, 4294901760
        %v1322 = vsub.f32 %v374, %v1321
        %1323 = vmatprep.subr.mxu0 %v1322
        %v1324 = vand.u32 %v372, 4294901760
        %v1325 = vsub.f32 %v372, %v1324
        %1326 = vmatpush1.msra.mxu0 %v1325
        %v1327 = vand.u32 %v382, 4294901760
        %v1328 = vsub.f32 %v382, %v1327
        %1329 = vmatprep.subr.mxu0 %v1328
        %v1330 = vand.u32 %v380, 4294901760
        %v1331 = vsub.f32 %v380, %v1330
        %1332 = vmatpush1.msra.mxu0 %v1331
        %v1333 = vand.u32 %v390, 4294901760
        %v1334 = vsub.f32 %v390, %v1333
        %1335 = vmatprep.subr.mxu0 %v1334
        %v1336 = vand.u32 %v388, 4294901760
        %v1337 = vsub.f32 %v388, %v1336
        %1338 = vmatpush1.msra.mxu0 %v1337
        %v1339 = vand.u32 %v398, 4294901760
        %v1340 = vsub.f32 %v398, %v1339
        %1341 = vmatprep.subr.mxu0 %v1340
        %v1342 = vand.u32 %v396, 4294901760
        %v1343 = vsub.f32 %v396, %v1342
        %1344 = vmatpush1.msra.mxu0 %v1343
        %v1345 = vand.u32 %v406, 4294901760
        %v1346 = vsub.f32 %v406, %v1345
        %1347 = vmatprep.subr.mxu0 %v1346
        %v1348 = vand.u32 %v404, 4294901760
        %v1349 = vsub.f32 %v404, %v1348
        %1350 = vmatpush1.msra.mxu0 %v1349
        %1351 = vmatprep.subr.mxu0 0.0
        %1352 = vmatpush1.msra.mxu0 0.0
        %1353 = vmatprep.subr.mxu0 0.0
        %1354 = vmatpush1.msra.mxu0 0.0
        %1355 = vmatprep.subr.mxu0 0.0
        %1356 = vmatpush1.msra.mxu0 0.0
        %1357 = vmatprep.subr.mxu0 0.0
        %1358 = vmatpush1.msra.mxu0 0.0
        %1359 = vmatprep.subr.mxu0 0.0
        %1360 = vmatpush1.msra.mxu0 0.0
        %1361 = vmatprep.subr.mxu0 0.0
        %1362 = vmatpush1.msra.mxu0 0.0
        %1363 = vmatprep.subr.mxu0 0.0
        %1364 = vmatpush1.msra.mxu0 0.0
        %1365 = vmatprep.subr.mxu0 0.0
        %1366 = vmatpush1.msra.mxu0 0.0
        %1367 = vmatprep.subr.mxu0 0.0
        %1368 = vmatpush1.msra.mxu0 0.0
        %1369 = vmatprep.subr.mxu0 0.0
        %1370 = vmatpush1.msra.mxu0 0.0
        %1371 = vmatprep.subr.mxu0 0.0
        %1372 = vmatpush1.msra.mxu0 0.0
        %1373 = vmatprep.subr.mxu0 0.0
        %1374 = vmatpush1.msra.mxu0 0.0
        %1375 = vmatprep.subr.mxu0 0.0
        %1376 = vmatpush1.msra.mxu0 0.0
        %1377 = vmatprep.subr.mxu0 0.0
        %1378 = vmatpush1.msra.mxu0 0.0
        %1379 = vmatprep.subr.mxu0 0.0
        %1380 = vmatpush1.msra.mxu0 0.0
        %1381 = vmatprep.subr.mxu0 0.0
        %1382 = vmatpush1.msra.mxu0 0.0
        %1383 = vmatprep.subr.mxu0 0.0
        %1384 = vmatpush1.msra.mxu0 0.0
        %1385 = vmatprep.subr.mxu0 0.0
        %1386 = vmatpush1.msra.mxu0 0.0
        %1387 = vmatprep.subr.mxu0 0.0
        %1388 = vmatpush1.msra.mxu0 0.0
        %1389 = vmatprep.subr.mxu0 0.0
        %1390 = vmatpush1.msra.mxu0 0.0
        %1391 = vmatprep.subr.mxu0 0.0
        %1392 = vmatpush1.msra.mxu0 0.0
        %1393 = vmatprep.subr.mxu0 0.0
        %1394 = vmatpush1.msra.mxu0 0.0
        %1395 = vmatprep.subr.mxu0 0.0
        %1396 = vmatpush1.msra.mxu0 0.0
        %1397 = vmatprep.subr.mxu0 0.0
        %1398 = vmatpush1.msra.mxu0 0.0
        %1399 = vmatprep.mubr.f32.mxu0 0.0
        %v1400 = vand.u32 %v410, 4294901760
        %v1401 = vsub.f32 %v410, %v1400
        %1402 = vmatmul.mubr.f32.gmra.mrb[0].mxu0 %v1401
        %v1403 = vpop.f32.mrb[0].mxu0
        %v1404 = vadd.f32 %v1299, %v1403
        %v1405 = vpop.f32.mrb[0].mxu0
        %v1406 = vadd.f32 %v1301, %v1405
        %1407 = vdwg.mxu0
        %v1408 = vand.u32 %v350, 4294901760
        %1409 = vmatprep.subr.mxu0 %v1408
        %v1410 = vand.u32 %v348, 4294901760
        %1411 = vmatpush1.msra.mxu0 %v1410
        %v1412 = vand.u32 %v358, 4294901760
        %1413 = vmatprep.subr.mxu0 %v1412
        %v1414 = vand.u32 %v356, 4294901760
        %1415 = vmatpush1.msra.mxu0 %v1414
        %v1416 = vand.u32 %v366, 4294901760
        %1417 = vmatprep.subr.mxu0 %v1416
        %v1418 = vand.u32 %v364, 4294901760
        %1419 = vmatpush1.msra.mxu0 %v1418
        %v1420 = vand.u32 %v374, 4294901760
        %1421 = vmatprep.subr.mxu0 %v1420
        %v1422 = vand.u32 %v372, 4294901760
        %1423 = vmatpush1.msra.mxu0 %v1422
        %v1424 = vand.u32 %v382, 4294901760
        %1425 = vmatprep.subr.mxu0 %v1424
        %v1426 = vand.u32 %v380, 4294901760
        %1427 = vmatpush1.msra.mxu0 %v1426
        %v1428 = vand.u32 %v390, 4294901760
        %1429 = vmatprep.subr.mxu0 %v1428
        %v1430 = vand.u32 %v388, 4294901760
        %1431 = vmatpush1.msra.mxu0 %v1430
        %v1432 = vand.u32 %v398, 4294901760
        %1433 = vmatprep.subr.mxu0 %v1432
        %v1434 = vand.u32 %v396, 4294901760
        %1435 = vmatpush1.msra.mxu0 %v1434
        %v1436 = vand.u32 %v406, 4294901760
        %1437 = vmatprep.subr.mxu0 %v1436
        %v1438 = vand.u32 %v404, 4294901760
        %1439 = vmatpush1.msra.mxu0 %v1438
        %1440 = vmatprep.subr.mxu0 0.0
        %1441 = vmatpush1.msra.mxu0 0.0
        %1442 = vmatprep.subr.mxu0 0.0
        %1443 = vmatpush1.msra.mxu0 0.0
        %1444 = vmatprep.subr.mxu0 0.0
        %1445 = vmatpush1.msra.mxu0 0.0
        %1446 = vmatprep.subr.mxu0 0.0
        %1447 = vmatpush1.msra.mxu0 0.0
        %1448 = vmatprep.subr.mxu0 0.0
        %1449 = vmatpush1.msra.mxu0 0.0
        %1450 = vmatprep.subr.mxu0 0.0
        %1451 = vmatpush1.msra.mxu0 0.0
        %1452 = vmatprep.subr.mxu0 0.0
        %1453 = vmatpush1.msra.mxu0 0.0
        %1454 = vmatprep.subr.mxu0 0.0
        %1455 = vmatpush1.msra.mxu0 0.0
        %1456 = vmatprep.subr.mxu0 0.0
        %1457 = vmatpush1.msra.mxu0 0.0
        %1458 = vmatprep.subr.mxu0 0.0
        %1459 = vmatpush1.msra.mxu0 0.0
        %1460 = vmatprep.subr.mxu0 0.0
        %1461 = vmatpush1.msra.mxu0 0.0
        %1462 = vmatprep.subr.mxu0 0.0
        %1463 = vmatpush1.msra.mxu0 0.0
        %1464 = vmatprep.subr.mxu0 0.0
        %1465 = vmatpush1.msra.mxu0 0.0
        %1466 = vmatprep.subr.mxu0 0.0
        %1467 = vmatpush1.msra.mxu0 0.0
        %1468 = vmatprep.subr.mxu0 0.0
        %1469 = vmatpush1.msra.mxu0 0.0
        %1470 = vmatprep.subr.mxu0 0.0
        %1471 = vmatpush1.msra.mxu0 0.0
        %1472 = vmatprep.subr.mxu0 0.0
        %1473 = vmatpush1.msra.mxu0 0.0
        %1474 = vmatprep.subr.mxu0 0.0
        %1475 = vmatpush1.msra.mxu0 0.0
        %1476 = vmatprep.subr.mxu0 0.0
        %1477 = vmatpush1.msra.mxu0 0.0
        %1478 = vmatprep.subr.mxu0 0.0
        %1479 = vmatpush1.msra.mxu0 0.0
        %1480 = vmatprep.subr.mxu0 0.0
        %1481 = vmatpush1.msra.mxu0 0.0
        %1482 = vmatprep.subr.mxu0 0.0
        %1483 = vmatpush1.msra.mxu0 0.0
        %1484 = vmatprep.subr.mxu0 0.0
        %1485 = vmatpush1.msra.mxu0 0.0
        %1486 = vmatprep.subr.mxu0 0.0
        %1487 = vmatpush1.msra.mxu0 0.0
        %1488 = vmatprep.mubr.f32.mxu0 0.0
        %v1489 = vand.u32 %v410, 4294901760
        %v1490 = vsub.f32 %v410, %v1489
        %v1491 = vand.u32 %v1490, 4294901760
        %1492 = vmatmul.mubr.f32.gmra.mrb[0].mxu0 %v1491
        %v1493 = vpop.f32.mrb[0].mxu0
        %v1494 = vadd.f32 %v1404, %v1493
        %v1495 = vpop.f32.mrb[0].mxu0
        %v1496 = vadd.f32 %v1406, %v1495
        %1497 = vdwg.mxu0
        %v1498 = vand.u32 %v350, 4294901760
        %v1499 = vsub.f32 %v350, %v1498
        %v1500 = vand.u32 %v1499, 4294901760
        %1501 = vmatprep.subr.mxu0 %v1500
        %v1502 = vand.u32 %v348, 4294901760
        %v1503 = vsub.f32 %v348, %v1502
        %v1504 = vand.u32 %v1503, 4294901760
        %1505 = vmatpush1.msra.mxu0 %v1504
        %v1506 = vand.u32 %v358, 4294901760
        %v1507 = vsub.f32 %v358, %v1506
        %v1508 = vand.u32 %v1507, 4294901760
        %1509 = vmatprep.subr.mxu0 %v1508
        %v1510 = vand.u32 %v356, 4294901760
        %v1511 = vsub.f32 %v356, %v1510
        %v1512 = vand.u32 %v1511, 4294901760
        %1513 = vmatpush1.msra.mxu0 %v1512
        %v1514 = vand.u32 %v366, 4294901760
        %v1515 = vsub.f32 %v366, %v1514
        %v1516 = vand.u32 %v1515, 4294901760
        %1517 = vmatprep.subr.mxu0 %v1516
        %v1518 = vand.u32 %v364, 4294901760
        %v1519 = vsub.f32 %v364, %v1518
        %v1520 = vand.u32 %v1519, 4294901760
        %1521 = vmatpush1.msra.mxu0 %v1520
        %v1522 = vand.u32 %v374, 4294901760
        %v1523 = vsub.f32 %v374, %v1522
        %v1524 = vand.u32 %v1523, 4294901760
        %1525 = vmatprep.subr.mxu0 %v1524
        %v1526 = vand.u32 %v372, 4294901760
        %v1527 = vsub.f32 %v372, %v1526
        %v1528 = vand.u32 %v1527, 4294901760
        %1529 = vmatpush1.msra.mxu0 %v1528
        %v1530 = vand.u32 %v382, 4294901760
        %v1531 = vsub.f32 %v382, %v1530
        %v1532 = vand.u32 %v1531, 4294901760
        %1533 = vmatprep.subr.mxu0 %v1532
        %v1534 = vand.u32 %v380, 4294901760
        %v1535 = vsub.f32 %v380, %v1534
        %v1536 = vand.u32 %v1535, 4294901760
        %1537 = vmatpush1.msra.mxu0 %v1536
        %v1538 = vand.u32 %v390, 4294901760
        %v1539 = vsub.f32 %v390, %v1538
        %v1540 = vand.u32 %v1539, 4294901760
        %1541 = vmatprep.subr.mxu0 %v1540
        %v1542 = vand.u32 %v388, 4294901760
        %v1543 = vsub.f32 %v388, %v1542
        %v1544 = vand.u32 %v1543, 4294901760
        %1545 = vmatpush1.msra.mxu0 %v1544
        %v1546 = vand.u32 %v398, 4294901760
        %v1547 = vsub.f32 %v398, %v1546
        %v1548 = vand.u32 %v1547, 4294901760
        %1549 = vmatprep.subr.mxu0 %v1548
        %v1550 = vand.u32 %v396, 4294901760
        %v1551 = vsub.f32 %v396, %v1550
        %v1552 = vand.u32 %v1551, 4294901760
        %1553 = vmatpush1.msra.mxu0 %v1552
        %v1554 = vand.u32 %v406, 4294901760
        %v1555 = vsub.f32 %v406, %v1554
        %v1556 = vand.u32 %v1555, 4294901760
        %1557 = vmatprep.subr.mxu0 %v1556
        %v1558 = vand.u32 %v404, 4294901760
        %v1559 = vsub.f32 %v404, %v1558
        %v1560 = vand.u32 %v1559, 4294901760
        %1561 = vmatpush1.msra.mxu0 %v1560
        %1562 = vmatprep.subr.mxu0 0.0
        %1563 = vmatpush1.msra.mxu0 0.0
        %1564 = vmatprep.subr.mxu0 0.0
        %1565 = vmatpush1.msra.mxu0 0.0
        %1566 = vmatprep.subr.mxu0 0.0
        %1567 = vmatpush1.msra.mxu0 0.0
        %1568 = vmatprep.subr.mxu0 0.0
        %1569 = vmatpush1.msra.mxu0 0.0
        %1570 = vmatprep.subr.mxu0 0.0
        %1571 = vmatpush1.msra.mxu0 0.0
        %1572 = vmatprep.subr.mxu0 0.0
        %1573 = vmatpush1.msra.mxu0 0.0
        %1574 = vmatprep.subr.mxu0 0.0
        %1575 = vmatpush1.msra.mxu0 0.0
        %1576 = vmatprep.subr.mxu0 0.0
        %1577 = vmatpush1.msra.mxu0 0.0
        %1578 = vmatprep.subr.mxu0 0.0
        %1579 = vmatpush1.msra.mxu0 0.0
        %1580 = vmatprep.subr.mxu0 0.0
        %1581 = vmatpush1.msra.mxu0 0.0
        %1582 = vmatprep.subr.mxu0 0.0
        %1583 = vmatpush1.msra.mxu0 0.0
        %1584 = vmatprep.subr.mxu0 0.0
        %1585 = vmatpush1.msra.mxu0 0.0
        %1586 = vmatprep.subr.mxu0 0.0
        %1587 = vmatpush1.msra.mxu0 0.0
        %1588 = vmatprep.subr.mxu0 0.0
        %1589 = vmatpush1.msra.mxu0 0.0
        %1590 = vmatprep.subr.mxu0 0.0
        %1591 = vmatpush1.msra.mxu0 0.0
        %1592 = vmatprep.subr.mxu0 0.0
        %1593 = vmatpush1.msra.mxu0 0.0
        %1594 = vmatprep.subr.mxu0 0.0
        %1595 = vmatpush1.msra.mxu0 0.0
        %1596 = vmatprep.subr.mxu0 0.0
        %1597 = vmatpush1.msra.mxu0 0.0
        %1598 = vmatprep.subr.mxu0 0.0
        %1599 = vmatpush1.msra.mxu0 0.0
        %1600 = vmatprep.subr.mxu0 0.0
        %1601 = vmatpush1.msra.mxu0 0.0
        %1602 = vmatprep.subr.mxu0 0.0
        %1603 = vmatpush1.msra.mxu0 0.0
        %1604 = vmatprep.subr.mxu0 0.0
        %1605 = vmatpush1.msra.mxu0 0.0
        %1606 = vmatprep.subr.mxu0 0.0
        %1607 = vmatpush1.msra.mxu0 0.0
        %1608 = vmatprep.subr.mxu0 0.0
        %1609 = vmatpush1.msra.mxu0 0.0
        %1610 = vmatprep.mubr.f32.mxu0 0.0
        %v1611 = vand.u32 %v410, 4294901760
        %1612 = vmatmul.mubr.f32.gmra.mrb[0].mxu0 %v1611
        %v1613 = vpop.f32.mrb[0].mxu0
        %v1614 = vadd.f32 %v1494, %v1613
        %v1615 = vpop.f32.mrb[0].mxu0
        %v1616 = vadd.f32 %v1496, %v1615
        %1617 = vdwg.mxu0
        %v1618 = vand.u32 %v350, 4294901760
        %1619 = vmatprep.subr.mxu0 %v1618
        %v1620 = vand.u32 %v348, 4294901760
        %1621 = vmatpush1.msra.mxu0 %v1620
        %v1622 = vand.u32 %v358, 4294901760
        %1623 = vmatprep.subr.mxu0 %v1622
        %v1624 = vand.u32 %v356, 4294901760
        %1625 = vmatpush1.msra.mxu0 %v1624
        %v1626 = vand.u32 %v366, 4294901760
        %1627 = vmatprep.subr.mxu0 %v1626
        %v1628 = vand.u32 %v364, 4294901760
        %1629 = vmatpush1.msra.mxu0 %v1628
        %v1630 = vand.u32 %v374, 4294901760
        %1631 = vmatprep.subr.mxu0 %v1630
        %v1632 = vand.u32 %v372, 4294901760
        %1633 = vmatpush1.msra.mxu0 %v1632
        %v1634 = vand.u32 %v382, 4294901760
        %1635 = vmatprep.subr.mxu0 %v1634
        %v1636 = vand.u32 %v380, 4294901760
        %1637 = vmatpush1.msra.mxu0 %v1636
        %v1638 = vand.u32 %v390, 4294901760
        %1639 = vmatprep.subr.mxu0 %v1638
        %v1640 = vand.u32 %v388, 4294901760
        %1641 = vmatpush1.msra.mxu0 %v1640
        %v1642 = vand.u32 %v398, 4294901760
        %1643 = vmatprep.subr.mxu0 %v1642
        %v1644 = vand.u32 %v396, 4294901760
        %1645 = vmatpush1.msra.mxu0 %v1644
        %v1646 = vand.u32 %v406, 4294901760
        %1647 = vmatprep.subr.mxu0 %v1646
        %v1648 = vand.u32 %v404, 4294901760
        %1649 = vmatpush1.msra.mxu0 %v1648
        %1650 = vmatprep.subr.mxu0 0.0
        %1651 = vmatpush1.msra.mxu0 0.0
        %1652 = vmatprep.subr.mxu0 0.0
        %1653 = vmatpush1.msra.mxu0 0.0
        %1654 = vmatprep.subr.mxu0 0.0
        %1655 = vmatpush1.msra.mxu0 0.0
        %1656 = vmatprep.subr.mxu0 0.0
        %1657 = vmatpush1.msra.mxu0 0.0
        %1658 = vmatprep.subr.mxu0 0.0
        %1659 = vmatpush1.msra.mxu0 0.0
        %1660 = vmatprep.subr.mxu0 0.0
        %1661 = vmatpush1.msra.mxu0 0.0
        %1662 = vmatprep.subr.mxu0 0.0
        %1663 = vmatpush1.msra.mxu0 0.0
        %1664 = vmatprep.subr.mxu0 0.0
        %1665 = vmatpush1.msra.mxu0 0.0
        %1666 = vmatprep.subr.mxu0 0.0
        %1667 = vmatpush1.msra.mxu0 0.0
        %1668 = vmatprep.subr.mxu0 0.0
        %1669 = vmatpush1.msra.mxu0 0.0
        %1670 = vmatprep.subr.mxu0 0.0
        %1671 = vmatpush1.msra.mxu0 0.0
        %1672 = vmatprep.subr.mxu0 0.0
        %1673 = vmatpush1.msra.mxu0 0.0
        %1674 = vmatprep.subr.mxu0 0.0
        %1675 = vmatpush1.msra.mxu0 0.0
        %1676 = vmatprep.subr.mxu0 0.0
        %1677 = vmatpush1.msra.mxu0 0.0
        %1678 = vmatprep.subr.mxu0 0.0
        %1679 = vmatpush1.msra.mxu0 0.0
        %1680 = vmatprep.subr.mxu0 0.0
        %1681 = vmatpush1.msra.mxu0 0.0
        %1682 = vmatprep.subr.mxu0 0.0
        %1683 = vmatpush1.msra.mxu0 0.0
        %1684 = vmatprep.subr.mxu0 0.0
        %1685 = vmatpush1.msra.mxu0 0.0
        %1686 = vmatprep.subr.mxu0 0.0
        %1687 = vmatpush1.msra.mxu0 0.0
        %1688 = vmatprep.subr.mxu0 0.0
        %1689 = vmatpush1.msra.mxu0 0.0
        %1690 = vmatprep.subr.mxu0 0.0
        %1691 = vmatpush1.msra.mxu0 0.0
        %1692 = vmatprep.subr.mxu0 0.0
        %1693 = vmatpush1.msra.mxu0 0.0
        %1694 = vmatprep.subr.mxu0 0.0
        %1695 = vmatpush1.msra.mxu0 0.0
        %1696 = vmatprep.subr.mxu0 0.0
        %1697 = vmatpush1.msra.mxu0 0.0
        %1698 = vmatprep.mubr.f32.mxu0 0.0
        %v1699 = vand.u32 %v410, 4294901760
        %1700 = vmatmul.mubr.f32.gmra.mrb[0].mxu0 %v1699
        %v1701 = vpop.f32.mrb[0].mxu0
        %v1702 = vadd.f32 %v1614, %v1701
        %v1703 = vpop.f32.mrb[0].mxu0
        %v1704 = vadd.f32 %v1616, %v1703
        %1705 = vdwg.mxu0
        %v1710 = vrot.slane %v1055, 4
        %v1711 = vrot.slane %v1057, 4
        %v1712 = vrot.slane %v1702, 4
        %v1713 = vrot.slane %v1704, 4
        %v1718 = vrcp.pop %v1710
        %v1719 = vmul.f32 %v1055, %v1718
        %v1720 = vrcp.pop %v1711
        %v1721 = vmul.f32 %v1057, %v1720
        %v1722 = vrcp.pop %v1712
        %v1723 = vmul.f32 %v1702, %v1722
        %v1724 = vrcp.pop %v1713
        %v1725 = vmul.f32 %v1704, %v1724
        %v1730 = vcombine.high %v1719, %v1721
        %v1731 = vcombine.high %v1723, %v1725
        %1734 = vst [vmem:[%s192] sm:$0xff] %v1730
        %1735 = vst [vmem:[%s192 + $0x8] sm:$0xff] %v1731
        %s1736 = sand.u32 %s91, 1
        %s1737 = scalar_lea.sflag [#allocation4], %s1736
        %s1738 = sand.u32 %s91, 1
        %s1739 = smul.addr %s1738, 16
        %s1740 = scalar_lea.vmem [#allocation7], %s1739
        // Predicated region
        $region37: #{tpu_custom_call.1} parent=27 // pred_check
          %p1741 = pneg %p101
        $region38: #{tpu_custom_call.1} parent=27 // pred_check_branch
          %1743 = sbr.rel (%p1741) target = $region40
        $region39: #{tpu_custom_call.1} parent=27 // pred_region
          %s1744 = smul.u32 4, %s25
          %s1746 = ssub.s32 256, 256
          %1747 = vsyncadd %s1737, %s1746
          %s1748 = smul.addr %s24, 8
          %s1749 = sadd.s32 %s1744, %s1748
          %s1750 = smul.addr %s1749, 64
          %s1751 = scalar_lea.hbm %s2, %s1750
          %s1753 = sshll.u32 %s1740, 4
          %s1754 = int_to_ptr.vmem [resolvable:$true] %s1753
          %1756 = dma.vmem_to_hbm [thread:$0]  %s1754, 256, %s1751, %s1737
        $region40: #{tpu_custom_call.1} parent=27 // pred_fallthru
          _
      $region28: #{tpu_custom_call.1} parent=5 // pred_fallthru
        _
      %p1757 = scmp.le.s32.totalorder 2, %s15
      // Predicated region
      $region41: #{tpu_custom_call.1} parent=5 // pred_check
        %p1758 = pneg %p1757
      $region42: #{tpu_custom_call.1} parent=5 // pred_check_branch
        %1760 = sbr.rel (%p1758) target = $region44
      $region43: #{tpu_custom_call.1} parent=5 // pred_region
        %s1761 = ssub.s32 %s15, 2
        // Predicated region
        $region45: #{tpu_custom_call.1} parent=43 // pred_check
          %p1762 = pneg %p107
        $region46: #{tpu_custom_call.1} parent=43 // pred_check_branch
          %1764 = sbr.rel (%p1762) target = $region48
        $region47: #{tpu_custom_call.1} parent=43 // pred_region
          %s1765 = sand.u32 %s92, 1
          %s1766 = scalar_lea.sflag [#allocation4], %s1765
          %s1767 = sand.u32 %s92, 1
          %s1768 = smul.addr %s1767, 16
          %s1769 = scalar_lea.vmem [#allocation7], %s1768
          %1770 = dma.done %s1766, 256
        $region48: #{tpu_custom_call.1} parent=43 // pred_fallthru
          _
      $region44: #{tpu_custom_call.1} parent=5 // pred_fallthru
        _
    $region6: #{tpu_custom_call.1} parent=1 // loop_footer
      %s19 = sadd.s32 1, %s15
    $region7: #{tpu_custom_call.1} parent=1 // loop_footer_branch
      %14 = sbr.rel target = $region3
    $region8: #{tpu_custom_call.1} parent=1 // loop_exit
      _
    %1771 = vsyncpa [#allocation3], 1
    %s1772 = scalar_lea.sflag [#allocation3], 1
    %1773 = vsyncpa %s1772, 1
    %1774 = vsyncpa [#allocation6], 1
    %s1775 = scalar_lea.sflag [#allocation6], 1
    %1776 = vsyncpa %s1775, 1
    %1777 = vsyncpa [#allocation4], 1
    %s1778 = scalar_lea.sflag [#allocation4], 1
    %1779 = vsyncpa %s1778, 1

</llo_original>
